<compile_context>
chip_gen: v7x
topology: tpu7x:2x2x1
jax: 0.10.0
libtpu: 0.0.40
codegen_flags: <defaults>
</compile_context>

<pallas_src>
import numpy as np
import jax
import jax.numpy as jnp
from jax.experimental import pallas as pl
from jax.experimental.pallas import tpu as pltpu


# --------------------------------------------------------------------------- #
# Host-side static construction (exact replica of the PyTorch operator)       #
# --------------------------------------------------------------------------- #
def _motion_blur_operator_np(shape_x, shape_y, a, b, time_frame=1.0, in_channels=1):
    """Replicates motion_blur_operator() from the reference (incl. its reshape)."""
    u = np.fft.fftfreq(shape_x)[None, :]                       # (1, shape_x)
    u = np.repeat(u[None, :, :], in_channels, axis=0)          # (C, 1, shape_x)
    v = np.fft.fftfreq(shape_y)[:, None]                       # (shape_y, 1)
    v = np.repeat(v[None, :, :], in_channels, axis=0)          # (C, shape_y, 1)
    omega = np.pi * (u * a + v * b)                            # (C, shape_y, shape_x)
    omega_safe = np.where(omega == 0.0, 1.0, omega)
    H = time_frame / omega_safe * np.sin(omega) * np.exp(-1j * omega)
    H = np.where(omega == 0.0, 1.0 + 0.0j, H)
    return H.reshape(in_channels, shape_x, shape_y)            # (C, shape_x, shape_y)


def _pick_images_per_block(num_images, rows_per_image, max_rows=256):
    """Images (batch*channel) per grid step.

    Perf-review rules:
      * cap the streamed row block R = tb*rows_per_image at the MXU-native
        dimension (256 on v6e/v7x) -- extra rows in the block-diagonal x-DFT
        operator are wasted MXU passes / VMEM,
      * keep tb <= num_images//2 so the grid has >= 2 parallel steps (both v7x
        TensorCores get work),
      * tb must divide num_images (uniform grid).
    rows_per_image is already padded to a multiple of 8 by the caller, so every
    choice yields an (8,128)-legal block; rows_per_image > max_rows => tb = 1
    (Kron dropped, operator is Fx itself).
    """
    if num_images <= 1:
        return 1
    limit = max(1, min(max_rows // max(rows_per_image, 1), num_images // 2))
    tb = 1
    for d in range(1, num_images + 1):
        if num_images % d == 0 and d <= limit:
            tb = d
    return tb


# --------------------------------------------------------------------------- #
# Kernel: 11 bf16 MXU matmuls (f32 accumulation) + VPU complex arithmetic      #
# --------------------------------------------------------------------------- #
def _make_motion_blur_kernel(tb):
    def kernel(cy_ref, sy_ref, cys_ref, bdc_ref, bds_ref, bdm_ref, bdp_ref,
               hr_ref, hi_ref, x_ref, out_ref):
        f32, bf16 = jnp.float32, jnp.bfloat16
        x = x_ref[...]                      # (R, Nyp) bf16 image rows, row = (b, m)
        cy, sy, cys = cy_ref[...], sy_ref[...], cys_ref[...]
        bdc, bds = bdc_ref[...], bds_ref[...]
        bdm, bdp = bdm_ref[...], bdp_ref[...]

        # forward DFT along y (real input):  A = X @ (Cy - i*Sy)        [2 matmuls]
        ar = jnp.dot(x, cy, preferred_element_type=f32)
        ai = -jnp.dot(x, sy, preferred_element_type=f32)

        # forward DFT along x for every image in the block (I_tb (x) Fx),
        # Karatsuba form, left operand (BDc - i*BDs)                    [3 matmuls]
        t1 = jnp.dot(bdc, ar.astype(bf16), preferred_element_type=f32)
        t2 = jnp.dot(bds, ai.astype(bf16), preferred_element_type=f32)
        t3 = jnp.dot(bdm, (ar + ai).astype(bf16), preferred_element_type=f32)
        yr = t1 + t2                        # BDc@ar + BDs@ai
        yi = t3 - t1 + t2                   # BDc@ai - BDs@ar

        # frequency-domain filter; 1/(Nx*Ny) ifft norm is pre-folded into H.
        hr, hi = hr_ref[...], hi_ref[...]
        if tb > 1:                          # replicate the per-image H over the block
            hr = jnp.concatenate([hr] * tb, axis=0)
            hi = jnp.concatenate([hi] * tb, axis=0)
        zr = yr * hr - yi * hi
        zi = yr * hi + yi * hr

        # inverse DFT along x, Karatsuba, left operand (BDc + i*BDs)    [3 matmuls]
        s1 = jnp.dot(bdc, zr.astype(bf16), preferred_element_type=f32)
        s2 = jnp.dot(bds, zi.astype(bf16), preferred_element_type=f32)
        s3 = jnp.dot(bdp, (zr + zi).astype(bf16), preferred_element_type=f32)
        ur = s1 - s2                        # BDc@zr - BDs@zi
        ui = s3 - s1 - s2                   # BDc@zi + BDs@zr

        # inverse DFT along y, Karatsuba, right operand (Cy + i*Sy)     [3 matmuls]
        r1 = jnp.dot(ur.astype(bf16), cy, preferred_element_type=f32)
        r2 = jnp.dot(ui.astype(bf16), sy, preferred_element_type=f32)
        r3 = jnp.dot((ur + ui).astype(bf16), cys, preferred_element_type=f32)
        wr = r1 - r2                        # ur@Cy - ui@Sy
        wi = r3 - r1 - r2                   # ur@Sy + ui@Cy

        # torch.abs of the complex ifft result
        out_ref[...] = jnp.sqrt(wr * wr + wi * wi)

    return kernel


# --------------------------------------------------------------------------- #
# Wrapper                                                                     #
# --------------------------------------------------------------------------- #
def motion_blur_forward(img, h, v, time_frame=1.0, *, max_rows=256):
    """Mirrors MotionBlur(h, v, Time_frame, shape_x, shape_y).forward(img)."""
    img = jnp.asarray(img, jnp.float32)
    if img.ndim != 4:
        raise ValueError("expected img of shape (batch, channel, shape_x, shape_y)")
    B, C, Nx, Ny = img.shape
    BC = B * C

    # ---- static operator construction on the host (float64 -> bf16 / f32) ----
    H2d = _motion_blur_operator_np(Nx, Ny, h, v, time_frame, in_channels=1)[0]  # (Nx, Ny)

    m = np.arange(Nx, dtype=np.float64)
    n = np.arange(Ny, dtype=np.float64)
    Cx = np.cos(2.0 * np.pi * np.outer(m, m) / Nx)           # (Nx, Nx), symmetric
    Sx = np.sin(2.0 * np.pi * np.outer(m, m) / Nx)
    Cy = np.cos(2.0 * np.pi * np.outer(n, n) / Ny)           # (Ny, Ny), symmetric
    Sy = np.sin(2.0 * np.pi * np.outer(n, n) / Ny)

    Nxp = ((Nx + 7) // 8) * 8                                 # sublane-align rows
    Nyp = ((Ny + 127) // 128) * 128                           # lane-align columns
    tb = _pick_images_per_block(BC, Nxp, max_rows=max_rows)   # images per grid step
    R = tb * Nxp                                              # streamed rows per step

    def pad2(a, rows, cols):
        out = np.zeros((rows, cols), dtype=np.float64)
        out[: a.shape[0], : a.shape[1]] = a
        return out

    Cxp, Sxp = pad2(Cx, Nxp, Nxp), pad2(Sx, Nxp, Nxp)
    eye = np.eye(tb, dtype=np.float64)
    BDc = np.kron(eye, Cxp)                                   # (R, R) block-diag x-DFT
    BDs = np.kron(eye, Sxp)

    Hs = H2d * (1.0 / float(Nx * Ny))                         # ifft2 norm folded in

    bf16, f32 = jnp.bfloat16, jnp.float32
    cy_j  = jnp.asarray(pad2(Cy, Nyp, Nyp), bf16)
    sy_j  = jnp.asarray(pad2(Sy, Nyp, Nyp), bf16)
    cys_j = jnp.asarray(pad2(Cy + Sy, Nyp, Nyp), bf16)        # Karatsuba helper
    bdc_j = jnp.asarray(BDc, bf16)
    bds_j = jnp.asarray(BDs, bf16)
    bdm_j = jnp.asarray(BDc - BDs, bf16)                      # Karatsuba helper
    bdp_j = jnp.asarray(BDc + BDs, bf16)                      # Karatsuba helper
    hr_j  = jnp.asarray(pad2(np.real(Hs), Nxp, Nyp), f32)     # un-tiled per-image H
    hi_j  = jnp.asarray(pad2(np.imag(Hs), Nxp, Nyp), f32)

    # ---- data: per-image row/col padding, flatten (B, C) into streamed rows ----
    x3 = img.reshape(BC, Nx, Ny)
    if Nxp != Nx or Nyp != Ny:
        x3 = jnp.pad(x3, ((0, 0), (0, Nxp - Nx), (0, Nyp - Ny)))
    x2 = x3.reshape(BC * Nxp, Nyp).astype(bf16)               # bf16 stream, halves DMA

    const = lambda i: (0, 0)
    out_flat = pl.pallas_call(
        _make_motion_blur_kernel(tb),
        out_shape=jax.ShapeDtypeStruct((BC * Nxp, Nyp), jnp.float32),
        grid=(BC // tb,),
        in_specs=[
            pl.BlockSpec((Nyp, Nyp), const),                  # Cy
            pl.BlockSpec((Nyp, Nyp), const),                  # Sy
            pl.BlockSpec((Nyp, Nyp), const),                  # Cy + Sy
            pl.BlockSpec((R, R), const),                      # I_tb (x) Cx
            pl.BlockSpec((R, R), const),                      # I_tb (x) Sx
            pl.BlockSpec((R, R), const),                      # I_tb (x) (Cx - Sx)
            pl.BlockSpec((R, R), const),                      # I_tb (x) (Cx + Sx)
            pl.BlockSpec((Nxp, Nyp), const),                  # Re(H)/(Nx*Ny)
            pl.BlockSpec((Nxp, Nyp), const),                  # Im(H)/(Nx*Ny)
            pl.BlockSpec((R, Nyp), lambda i: (i, 0)),         # image rows (streamed)
        ],
        out_specs=pl.BlockSpec((R, Nyp), lambda i: (i, 0)),
        compiler_params=pltpu.CompilerParams(
            dimension_semantics=("parallel",),
            vmem_limit_bytes=48 * 1024 * 1024),
    )(cy_j, sy_j, cys_j, bdc_j, bds_j, bdm_j, bdp_j, hr_j, hi_j, x2)

    out = out_flat.reshape(BC, Nxp, Nyp)[:, :Nx, :Ny].reshape(B, C, Nx, Ny)
    return out


# --------------------------------------------------------------------------- #
# Test                                                                        #
# --------------------------------------------------------------------------- #
if __name__ == "__main__":
    key = jax.random.PRNGKey(0)
    B, C, NX, NY = 2, 4, 16, 32          # non-square to exercise x/y handling
    x = jax.random.uniform(key, (B, C, NX, NY), dtype=jnp.float32)
    h, v, t = 0.5, 0.7, 1.0

    out = jax.block_until_ready(motion_blur_forward(x, h=h, v=v, time_frame=t))
    assert out.shape == (B, C, NX, NY)

    # reference: the PyTorch module's forward, replicated with float64 numpy FFTs
    xn = np.asarray(x, dtype=np.float64)
    Hc = _motion_blur_operator_np(NX, NY, h, v, t, in_channels=C)   # (C, NX, NY)
    ref = np.abs(np.fft.ifftn(np.fft.fftn(xn) * Hc[None, :, :, :]))

    err = np.abs(np.asarray(out, dtype=np.float64) - ref)
    err_max = float(err.max())
    err_rms = float(np.sqrt((err ** 2).mean()))
    # bf16 operands with f32 accumulation: DFT round-off budget is a few 1e-3 RMS;
    # bounds are still ~10x below what any layout / sign / transpose bug produces.
    assert err_max < 6e-2 and err_rms < 2e-2, (
        f"max abs err = {err_max}, rms err = {err_rms}")
    print("KERNEL_OK")
</pallas_src>

<mosaic_0001>
module attributes {stable_mosaic.version = 11 : i64} {
  func.func @kernel(%arg0: i32, %arg1: memref<128x128xbf16, #tpu.memory_space<vmem>>, %arg2: memref<128x128xbf16, #tpu.memory_space<vmem>>, %arg3: memref<128x128xbf16, #tpu.memory_space<vmem>>, %arg4: memref<64x64xbf16, #tpu.memory_space<vmem>>, %arg5: memref<64x64xbf16, #tpu.memory_space<vmem>>, %arg6: memref<64x64xbf16, #tpu.memory_space<vmem>>, %arg7: memref<64x64xbf16, #tpu.memory_space<vmem>>, %arg8: memref<16x128xf32, #tpu.memory_space<vmem>>, %arg9: memref<16x128xf32, #tpu.memory_space<vmem>>, %arg10: memref<64x128xbf16, #tpu.memory_space<vmem>>, %arg11: memref<64x128xf32, #tpu.memory_space<vmem>>) attributes {dimension_semantics = [#tpu.dimension_semantics<parallel>], iteration_bounds = array<i64: 2>, scalar_prefetch = 0 : i64, scratch_operands = 0 : i64, tpu.core_type = #tpu.core_type<tc>, window_params = [{pipeline_mode = #tpu.pipeline_mode<synchronous>, transform_indices = @transform_0, window_bounds = array<i64: 128, 128>}, {pipeline_mode = #tpu.pipeline_mode<synchronous>, transform_indices = @transform_1, window_bounds = array<i64: 128, 128>}, {pipeline_mode = #tpu.pipeline_mode<synchronous>, transform_indices = @transform_2, window_bounds = array<i64: 128, 128>}, {pipeline_mode = #tpu.pipeline_mode<synchronous>, transform_indices = @transform_3, window_bounds = array<i64: 64, 64>}, {pipeline_mode = #tpu.pipeline_mode<synchronous>, transform_indices = @transform_4, window_bounds = array<i64: 64, 64>}, {pipeline_mode = #tpu.pipeline_mode<synchronous>, transform_indices = @transform_5, window_bounds = array<i64: 64, 64>}, {pipeline_mode = #tpu.pipeline_mode<synchronous>, transform_indices = @transform_6, window_bounds = array<i64: 64, 64>}, {pipeline_mode = #tpu.pipeline_mode<synchronous>, transform_indices = @transform_7, window_bounds = array<i64: 16, 128>}, {pipeline_mode = #tpu.pipeline_mode<synchronous>, transform_indices = @transform_8, window_bounds = array<i64: 16, 128>}, {transform_indices = @transform_9, window_bounds = array<i64: 64, 128>}, {transform_indices = @transform_10, window_bounds = array<i64: 64, 128>}]} {
    %c0 = arith.constant 0 : index
    %c0_0 = arith.constant 0 : index
    %0 = vector.load %arg10[%c0, %c0_0] : memref<64x128xbf16, #tpu.memory_space<vmem>>, vector<64x128xbf16>
    %c0_1 = arith.constant 0 : index
    %c0_2 = arith.constant 0 : index
    %1 = vector.load %arg1[%c0_1, %c0_2] : memref<128x128xbf16, #tpu.memory_space<vmem>>, vector<128x128xbf16>
    %c0_3 = arith.constant 0 : index
    %c0_4 = arith.constant 0 : index
    %2 = vector.load %arg2[%c0_3, %c0_4] : memref<128x128xbf16, #tpu.memory_space<vmem>>, vector<128x128xbf16>
    %c0_5 = arith.constant 0 : index
    %c0_6 = arith.constant 0 : index
    %3 = vector.load %arg3[%c0_5, %c0_6] : memref<128x128xbf16, #tpu.memory_space<vmem>>, vector<128x128xbf16>
    %c0_7 = arith.constant 0 : index
    %c0_8 = arith.constant 0 : index
    %4 = vector.load %arg4[%c0_7, %c0_8] : memref<64x64xbf16, #tpu.memory_space<vmem>>, vector<64x64xbf16>
    %c0_9 = arith.constant 0 : index
    %c0_10 = arith.constant 0 : index
    %5 = vector.load %arg5[%c0_9, %c0_10] : memref<64x64xbf16, #tpu.memory_space<vmem>>, vector<64x64xbf16>
    %c0_11 = arith.constant 0 : index
    %c0_12 = arith.constant 0 : index
    %6 = vector.load %arg6[%c0_11, %c0_12] : memref<64x64xbf16, #tpu.memory_space<vmem>>, vector<64x64xbf16>
    %c0_13 = arith.constant 0 : index
    %c0_14 = arith.constant 0 : index
    %7 = vector.load %arg7[%c0_13, %c0_14] : memref<64x64xbf16, #tpu.memory_space<vmem>>, vector<64x64xbf16>
    %cst = arith.constant dense<0.000000e+00> : vector<64x128xf32>
    %8 = tpu.matmul %0, %1, %cst {dimension_numbers = #tpu.dot_dimension_numbers<[1], [0], [0], [1], [0, 0, 1, 1], [], []>} : vector<64x128xbf16>, vector<128x128xbf16>, vector<64x128xf32> -> vector<64x128xf32>
    %cst_15 = arith.constant dense<0.000000e+00> : vector<64x128xf32>
    %9 = tpu.matmul %0, %2, %cst_15 {dimension_numbers = #tpu.dot_dimension_numbers<[1], [0], [0], [1], [0, 0, 1, 1], [], []>} : vector<64x128xbf16>, vector<128x128xbf16>, vector<64x128xf32> -> vector<64x128xf32>
    %cst_16 = arith.constant 0.000000e+00 : f32
    %10 = vector.broadcast %cst_16 : f32 to vector<64x128xf32>
    %11 = arith.subf %10, %9 : vector<64x128xf32>
    %12 = arith.truncf %8 : vector<64x128xf32> to vector<64x128xbf16>
    %cst_17 = arith.constant dense<0.000000e+00> : vector<64x128xf32>
    %13 = tpu.matmul %4, %12, %cst_17 {dimension_numbers = #tpu.dot_dimension_numbers<[1], [0], [0], [1], [0, 0, 1, 1], [], []>} : vector<64x64xbf16>, vector<64x128xbf16>, vector<64x128xf32> -> vector<64x128xf32>
    %14 = arith.truncf %11 : vector<64x128xf32> to vector<64x128xbf16>
    %cst_18 = arith.constant dense<0.000000e+00> : vector<64x128xf32>
    %15 = tpu.matmul %5, %14, %cst_18 {dimension_numbers = #tpu.dot_dimension_numbers<[1], [0], [0], [1], [0, 0, 1, 1], [], []>} : vector<64x64xbf16>, vector<64x128xbf16>, vector<64x128xf32> -> vector<64x128xf32>
    %16 = arith.addf %8, %11 : vector<64x128xf32>
    %17 = arith.truncf %16 : vector<64x128xf32> to vector<64x128xbf16>
    %cst_19 = arith.constant dense<0.000000e+00> : vector<64x128xf32>
    %18 = tpu.matmul %6, %17, %cst_19 {dimension_numbers = #tpu.dot_dimension_numbers<[1], [0], [0], [1], [0, 0, 1, 1], [], []>} : vector<64x64xbf16>, vector<64x128xbf16>, vector<64x128xf32> -> vector<64x128xf32>
    %19 = arith.addf %13, %15 : vector<64x128xf32>
    %20 = arith.subf %18, %13 : vector<64x128xf32>
    %21 = arith.addf %20, %15 : vector<64x128xf32>
    %c0_20 = arith.constant 0 : index
    %c0_21 = arith.constant 0 : index
    %22 = vector.load %arg8[%c0_20, %c0_21] : memref<16x128xf32, #tpu.memory_space<vmem>>, vector<16x128xf32>
    %c0_22 = arith.constant 0 : index
    %c0_23 = arith.constant 0 : index
    %23 = vector.load %arg9[%c0_22, %c0_23] : memref<16x128xf32, #tpu.memory_space<vmem>>, vector<16x128xf32>
    %24 = tpu.concatenate %22, %22, %22, %22 in 0 : vector<16x128xf32>, vector<16x128xf32>, vector<16x128xf32>, vector<16x128xf32> -> vector<64x128xf32>
    %25 = tpu.concatenate %23, %23, %23, %23 in 0 : vector<16x128xf32>, vector<16x128xf32>, vector<16x128xf32>, vector<16x128xf32> -> vector<64x128xf32>
    %26 = arith.mulf %19, %24 : vector<64x128xf32>
    %27 = arith.mulf %21, %25 : vector<64x128xf32>
    %28 = arith.subf %26, %27 : vector<64x128xf32>
    %29 = arith.mulf %19, %25 : vector<64x128xf32>
    %30 = arith.mulf %21, %24 : vector<64x128xf32>
    %31 = arith.addf %29, %30 : vector<64x128xf32>
    %32 = arith.truncf %28 : vector<64x128xf32> to vector<64x128xbf16>
    %cst_24 = arith.constant dense<0.000000e+00> : vector<64x128xf32>
    %33 = tpu.matmul %4, %32, %cst_24 {dimension_numbers = #tpu.dot_dimension_numbers<[1], [0], [0], [1], [0, 0, 1, 1], [], []>} : vector<64x64xbf16>, vector<64x128xbf16>, vector<64x128xf32> -> vector<64x128xf32>
    %34 = arith.truncf %31 : vector<64x128xf32> to vector<64x128xbf16>
    %cst_25 = arith.constant dense<0.000000e+00> : vector<64x128xf32>
    %35 = tpu.matmul %5, %34, %cst_25 {dimension_numbers = #tpu.dot_dimension_numbers<[1], [0], [0], [1], [0, 0, 1, 1], [], []>} : vector<64x64xbf16>, vector<64x128xbf16>, vector<64x128xf32> -> vector<64x128xf32>
    %36 = arith.addf %28, %31 : vector<64x128xf32>
    %37 = arith.truncf %36 : vector<64x128xf32> to vector<64x128xbf16>
    %cst_26 = arith.constant dense<0.000000e+00> : vector<64x128xf32>
    %38 = tpu.matmul %7, %37, %cst_26 {dimension_numbers = #tpu.dot_dimension_numbers<[1], [0], [0], [1], [0, 0, 1, 1], [], []>} : vector<64x64xbf16>, vector<64x128xbf16>, vector<64x128xf32> -> vector<64x128xf32>
    %39 = arith.subf %33, %35 : vector<64x128xf32>
    %40 = arith.subf %38, %33 : vector<64x128xf32>
    %41 = arith.subf %40, %35 : vector<64x128xf32>
    %42 = arith.truncf %39 : vector<64x128xf32> to vector<64x128xbf16>
    %cst_27 = arith.constant dense<0.000000e+00> : vector<64x128xf32>
    %43 = tpu.matmul %42, %1, %cst_27 {dimension_numbers = #tpu.dot_dimension_numbers<[1], [0], [0], [1], [0, 0, 1, 1], [], []>} : vector<64x128xbf16>, vector<128x128xbf16>, vector<64x128xf32> -> vector<64x128xf32>
    %44 = arith.truncf %41 : vector<64x128xf32> to vector<64x128xbf16>
    %cst_28 = arith.constant dense<0.000000e+00> : vector<64x128xf32>
    %45 = tpu.matmul %44, %2, %cst_28 {dimension_numbers = #tpu.dot_dimension_numbers<[1], [0], [0], [1], [0, 0, 1, 1], [], []>} : vector<64x128xbf16>, vector<128x128xbf16>, vector<64x128xf32> -> vector<64x128xf32>
    %46 = arith.addf %39, %41 : vector<64x128xf32>
    %47 = arith.truncf %46 : vector<64x128xf32> to vector<64x128xbf16>
    %cst_29 = arith.constant dense<0.000000e+00> : vector<64x128xf32>
    %48 = tpu.matmul %47, %3, %cst_29 {dimension_numbers = #tpu.dot_dimension_numbers<[1], [0], [0], [1], [0, 0, 1, 1], [], []>} : vector<64x128xbf16>, vector<128x128xbf16>, vector<64x128xf32> -> vector<64x128xf32>
    %49 = arith.subf %43, %45 : vector<64x128xf32>
    %50 = arith.subf %48, %43 : vector<64x128xf32>
    %51 = arith.subf %50, %45 : vector<64x128xf32>
    %52 = arith.mulf %49, %49 : vector<64x128xf32>
    %53 = arith.mulf %51, %51 : vector<64x128xf32>
    %54 = arith.addf %52, %53 : vector<64x128xf32>
    %55 = math.sqrt %54 : vector<64x128xf32>
    %c0_30 = arith.constant 0 : index
    %c0_31 = arith.constant 0 : index
    %56 = vector.load %arg11[%c0_30, %c0_31] : memref<64x128xf32, #tpu.memory_space<vmem>>, vector<64x128xf32>
    tpu.vector_store %arg11[%c0_30, %c0_31], %55 {strides = array<i32>} : memref<64x128xf32, #tpu.memory_space<vmem>>, vector<64x128xf32>,
    return
  }
  func.func @transform_0(%arg0: i32) -> (i32, i32) {
    %c0_i32 = arith.constant 0 : i32
    %c0_i32_0 = arith.constant 0 : i32
    %c0_i32_1 = arith.constant 0 : i32
    return %c0_i32, %c0_i32_0 : i32, i32
  }
  func.func @transform_1(%arg0: i32) -> (i32, i32) {
    %c0_i32 = arith.constant 0 : i32
    %c0_i32_0 = arith.constant 0 : i32
    %c0_i32_1 = arith.constant 0 : i32
    return %c0_i32, %c0_i32_0 : i32, i32
  }
  func.func @transform_2(%arg0: i32) -> (i32, i32) {
    %c0_i32 = arith.constant 0 : i32
    %c0_i32_0 = arith.constant 0 : i32
    %c0_i32_1 = arith.constant 0 : i32
    return %c0_i32, %c0_i32_0 : i32, i32
  }
  func.func @transform_3(%arg0: i32) -> (i32, i32) {
    %c0_i32 = arith.constant 0 : i32
    %c0_i32_0 = arith.constant 0 : i32
    %c0_i32_1 = arith.constant 0 : i32
    return %c0_i32, %c0_i32_0 : i32, i32
  }
  func.func @transform_4(%arg0: i32) -> (i32, i32) {
    %c0_i32 = arith.constant 0 : i32
    %c0_i32_0 = arith.constant 0 : i32
    %c0_i32_1 = arith.constant 0 : i32
    return %c0_i32, %c0_i32_0 : i32, i32
  }
  func.func @transform_5(%arg0: i32) -> (i32, i32) {
    %c0_i32 = arith.constant 0 : i32
    %c0_i32_0 = arith.constant 0 : i32
    %c0_i32_1 = arith.constant 0 : i32
    return %c0_i32, %c0_i32_0 : i32, i32
  }
  func.func @transform_6(%arg0: i32) -> (i32, i32) {
    %c0_i32 = arith.constant 0 : i32
    %c0_i32_0 = arith.constant 0 : i32
    %c0_i32_1 = arith.constant 0 : i32
    return %c0_i32, %c0_i32_0 : i32, i32
  }
  func.func @transform_7(%arg0: i32) -> (i32, i32) {
    %c0_i32 = arith.constant 0 : i32
    %c0_i32_0 = arith.constant 0 : i32
    %c0_i32_1 = arith.constant 0 : i32
    return %c0_i32, %c0_i32_0 : i32, i32
  }
  func.func @transform_8(%arg0: i32) -> (i32, i32) {
    %c0_i32 = arith.constant 0 : i32
    %c0_i32_0 = arith.constant 0 : i32
    %c0_i32_1 = arith.constant 0 : i32
    return %c0_i32, %c0_i32_0 : i32, i32
  }
  func.func @transform_9(%arg0: i32) -> (i32, i32) {
    %c0_i32 = arith.constant 0 : i32
    %c0_i32_0 = arith.constant 0 : i32
    return %arg0, %c0_i32 : i32, i32
  }
  func.func @transform_10(%arg0: i32) -> (i32, i32) {
    %c0_i32 = arith.constant 0 : i32
    %c0_i32_0 = arith.constant 0 : i32
    return %arg0, %c0_i32 : i32, i32
  }
}

</mosaic_0001>

<llo_original>
// kernel: tpu_custom_call.1
$region0: #{tpu_custom_call.1}
  #allocation0 [shape = 'u32[]', space=smem, size = 0x4, offset = 0x4, fixed_abs, tag = 'smem constant byte address 0x4 - core index']
  #allocation1 [shape = 'u32[144,128]{1,0:T(1,128)}', space=vmem, size = 0x12000, scoped, tag = 'internal scratch']
  %s0 = inlined_call_operand.hbm [shape: bf16[128,128], index: 0, kind: input, shape index: {}]
  %s1 = inlined_call_operand.hbm [shape: bf16[128,128], index: 1, kind: input, shape index: {}]
  %s2 = inlined_call_operand.hbm [shape: bf16[128,128], index: 2, kind: input, shape index: {}]
  %s3 = inlined_call_operand.hbm [shape: bf16[64,64], index: 3, kind: input, shape index: {}]
  %s4 = inlined_call_operand.hbm [shape: bf16[64,64], index: 4, kind: input, shape index: {}]
  %s5 = inlined_call_operand.hbm [shape: bf16[64,64], index: 5, kind: input, shape index: {}]
  %s6 = inlined_call_operand.hbm [shape: bf16[64,64], index: 6, kind: input, shape index: {}]
  %s7 = inlined_call_operand.vmem [shape: f32[16,128], index: 7, kind: input, shape index: {}]
  %s8 = inlined_call_operand.hbm [shape: f32[16,128], index: 8, kind: input, shape index: {}]
  %s9 = inlined_call_operand.hbm [shape: bf16[128,128], index: 9, kind: input, shape index: {}]
  %s10 = inlined_call_operand.hbm [shape: f32[128,128], index: 10, kind: output, shape index: {}]
  %s11 = sld [smem:[#allocation0]]
  $region109: #{tpu_custom_call.1} parent=0
    _
  %s13 = ssub.s32 1, %s11
  %s14 = scalar_select 0, %s13, %s11
  $region1: #{tpu_custom_call.1} parent=0
    #allocation2 [shape = 'u8[32768]{0}', space=vmem, size = 0x8000, scoped, tag = 'input window, operand 0, single buffered']
    #allocation3 [shape = 's32[2]{0}', space=sflag, size = 0x8, scoped, tag = 'scoped memory for tpu_custom_call.1']
    #allocation4 [shape = 's32[2]{0}', space=sflag, size = 0x8, scoped, tag = 'scoped memory for tpu_custom_call.1']
    #allocation5 [shape = 'u8[32768]{0}', space=vmem, size = 0x8000, scoped, tag = 'input window, operand 1, single buffered']
    #allocation6 [shape = 's32[1]{0}', space=sflag, size = 0x4, scoped, tag = 'scoped memory for tpu_custom_call.1']
    #allocation7 [shape = 'u8[32768]{0}', space=vmem, size = 0x8000, scoped, tag = 'input window, operand 2, single buffered']
    #allocation8 [shape = 'u8[16384]{0}', space=vmem, size = 0x4000, scoped, tag = 'input window, operand 3, single buffered']
    #allocation9 [shape = 's32[1]{0}', space=sflag, size = 0x4, scoped, tag = 'scoped memory for tpu_custom_call.1']
    #allocation10 [shape = 'u8[16384]{0}', space=vmem, size = 0x4000, scoped, tag = 'input window, operand 4, single buffered']
    #allocation11 [shape = 'u8[16384]{0}', space=vmem, size = 0x4000, scoped, tag = 'input window, operand 5, single buffered']
    #allocation12 [shape = 's32[1]{0}', space=sflag, size = 0x4, scoped, tag = 'scoped memory for tpu_custom_call.1']
    #allocation13 [shape = 'u8[16384]{0}', space=vmem, size = 0x4000, scoped, tag = 'input window, operand 6, single buffered']
    #allocation14 [shape = 'u8[8192]{0}', space=vmem, size = 0x2000, scoped, tag = 'input window, operand 8, single buffered']
    #allocation15 [shape = 's32[1]{0}', space=sflag, size = 0x4, scoped, tag = 'scoped memory for tpu_custom_call.1']
    #allocation16 [shape = 'u8[32768]{0}', space=vmem, size = 0x8000, scoped, tag = 'input window, operand 9']
    #allocation17 [shape = 'u8[65536]{0}', space=vmem, size = 0x10000, scoped, tag = 'output window, operand 0']
    %15 = vsyncpa [#allocation3], 0
    %16 = vsyncpa [#allocation6], 0
    %17 = vsyncpa [#allocation9], 0
    %18 = vsyncpa [#allocation12], 0
    %19 = vsyncpa [#allocation15], 0
    %20 = vsyncpa [#allocation4], 0
    %s21 = scalar_lea.sflag [#allocation4], 1
    %22 = vsyncpa %s21, 0
    loop: start=0, step=1, limit=4
    $region2: #{tpu_custom_call.1} parent=1 // loop_pre_header
      _
    $region3: #{tpu_custom_call.1} parent=1 // loop_header
      %s24 = sphi 0, %s28
      %p25 = scmp.ge.s32.totalorder %s24, 4
      %s32 = sphi 0, %s32
      %s34 = sphi 0, %s32
      %s35 = sphi 0, %s34
      %s49 = sphi 0, %s35
      %s53 = sphi 0, %s53
      %s55 = sphi 0, %s53
      %s56 = sphi 0, %s55
      %s70 = sphi 0, %s56
      %s74 = sphi 0, %s74
      %s76 = sphi 0, %s74
      %s77 = sphi 0, %s76
      %s91 = sphi 0, %s77
      %s95 = sphi 0, %s95
      %s97 = sphi 0, %s95
      %s98 = sphi 0, %s97
      %s112 = sphi 0, %s98
      %s116 = sphi 0, %s116
      %s118 = sphi 0, %s116
      %s119 = sphi 0, %s118
      %s133 = sphi 0, %s119
      %s137 = sphi 0, %s137
      %s139 = sphi 0, %s137
      %s140 = sphi 0, %s139
      %s154 = sphi 0, %s140
      %s158 = sphi 0, %s158
      %s160 = sphi 0, %s158
      %s161 = sphi 0, %s160
      %s175 = sphi 0, %s161
      %s179 = sphi 0, %s179
      %s181 = sphi 0, %s179
      %s182 = sphi 0, %s181
      %s196 = sphi 0, %s182
      %s200 = sphi 0, %s200
      %s202 = sphi 0, %s200
      %s203 = sphi 0, %s202
      %s217 = sphi 0, %s203
      %s223 = sphi 0, %s225
      %s226 = sphi 0, %s223
      %s227 = sphi 0, %s226
      %s243 = sphi 0, %s227
      %s249 = sphi 0, %s251
      %s252 = sphi 0, %s249
      %s253 = sphi 0, %s252
      %s269 = sphi 0, %s253
    $region4: #{tpu_custom_call.1} parent=1 // loop_header_branch
      %27 = sbr.rel (%p25) target = $region8
    $region5: #{tpu_custom_call.1} parent=1 // loop_body
      %s29 = ssub.s32 %s24, 1
      %s30 = ssub.s32 %s24, 2
      %s31 = sadd.s32 %s24, 1
      %s33 = sadd.s32 %s32, 1
      %p36 = scmp.eq.s32.totalorder %s24, 1
      %p37 = scmp.ne.s32.totalorder %s32, %s34
      %p38 = scmp.eq.s32.totalorder %s24, 0
      %p39 = por %p37, %p38
      %p40 = scmp.ne.s32.totalorder %s32, %s34
      %p41 = scmp.eq.s32.totalorder %s29, 1
      %p42 = por %p40, %p41
      %p43 = scmp.ne.s32.totalorder %s34, %s35
      %p44 = scmp.eq.s32.totalorder %s29, 0
      %p45 = por %p43, %p44
      %p46 = scmp.ne.s32.totalorder %s34, %s35
      %p47 = scmp.eq.s32.totalorder %s30, 1
      %p48 = por %p46, %p47
      %p50 = scmp.ne.s32.totalorder %s35, %s49
      %p51 = scmp.eq.s32.totalorder %s30, 0
      %p52 = por %p50, %p51
      %s54 = sadd.s32 %s53, 1
      %p57 = scmp.eq.s32.totalorder %s24, 1
      %p58 = scmp.ne.s32.totalorder %s53, %s55
      %p59 = scmp.eq.s32.totalorder %s24, 0
      %p60 = por %p58, %p59
      %p61 = scmp.ne.s32.totalorder %s53, %s55
      %p62 = scmp.eq.s32.totalorder %s29, 1
      %p63 = por %p61, %p62
      %p64 = scmp.ne.s32.totalorder %s55, %s56
      %p65 = scmp.eq.s32.totalorder %s29, 0
      %p66 = por %p64, %p65
      %p67 = scmp.ne.s32.totalorder %s55, %s56
      %p68 = scmp.eq.s32.totalorder %s30, 1
      %p69 = por %p67, %p68
      %p71 = scmp.ne.s32.totalorder %s56, %s70
      %p72 = scmp.eq.s32.totalorder %s30, 0
      %p73 = por %p71, %p72
      %s75 = sadd.s32 %s74, 1
      %p78 = scmp.eq.s32.totalorder %s24, 1
      %p79 = scmp.ne.s32.totalorder %s74, %s76
      %p80 = scmp.eq.s32.totalorder %s24, 0
      %p81 = por %p79, %p80
      %p82 = scmp.ne.s32.totalorder %s74, %s76
      %p83 = scmp.eq.s32.totalorder %s29, 1
      %p84 = por %p82, %p83
      %p85 = scmp.ne.s32.totalorder %s76, %s77
      %p86 = scmp.eq.s32.totalorder %s29, 0
      %p87 = por %p85, %p86
      %p88 = scmp.ne.s32.totalorder %s76, %s77
      %p89 = scmp.eq.s32.totalorder %s30, 1
      %p90 = por %p88, %p89
      %p92 = scmp.ne.s32.totalorder %s77, %s91
      %p93 = scmp.eq.s32.totalorder %s30, 0
      %p94 = por %p92, %p93
      %s96 = sadd.s32 %s95, 1
      %p99 = scmp.eq.s32.totalorder %s24, 1
      %p100 = scmp.ne.s32.totalorder %s95, %s97
      %p101 = scmp.eq.s32.totalorder %s24, 0
      %p102 = por %p100, %p101
      %p103 = scmp.ne.s32.totalorder %s95, %s97
      %p104 = scmp.eq.s32.totalorder %s29, 1
      %p105 = por %p103, %p104
      %p106 = scmp.ne.s32.totalorder %s97, %s98
      %p107 = scmp.eq.s32.totalorder %s29, 0
      %p108 = por %p106, %p107
      %p109 = scmp.ne.s32.totalorder %s97, %s98
      %p110 = scmp.eq.s32.totalorder %s30, 1
      %p111 = por %p109, %p110
      %p113 = scmp.ne.s32.totalorder %s98, %s112
      %p114 = scmp.eq.s32.totalorder %s30, 0
      %p115 = por %p113, %p114
      %s117 = sadd.s32 %s116, 1
      %p120 = scmp.eq.s32.totalorder %s24, 1
      %p121 = scmp.ne.s32.totalorder %s116, %s118
      %p122 = scmp.eq.s32.totalorder %s24, 0
      %p123 = por %p121, %p122
      %p124 = scmp.ne.s32.totalorder %s116, %s118
      %p125 = scmp.eq.s32.totalorder %s29, 1
      %p126 = por %p124, %p125
      %p127 = scmp.ne.s32.totalorder %s118, %s119
      %p128 = scmp.eq.s32.totalorder %s29, 0
      %p129 = por %p127, %p128
      %p130 = scmp.ne.s32.totalorder %s118, %s119
      %p131 = scmp.eq.s32.totalorder %s30, 1
      %p132 = por %p130, %p131
      %p134 = scmp.ne.s32.totalorder %s119, %s133
      %p135 = scmp.eq.s32.totalorder %s30, 0
      %p136 = por %p134, %p135
      %s138 = sadd.s32 %s137, 1
      %p141 = scmp.eq.s32.totalorder %s24, 1
      %p142 = scmp.ne.s32.totalorder %s137, %s139
      %p143 = scmp.eq.s32.totalorder %s24, 0
      %p144 = por %p142, %p143
      %p145 = scmp.ne.s32.totalorder %s137, %s139
      %p146 = scmp.eq.s32.totalorder %s29, 1
      %p147 = por %p145, %p146
      %p148 = scmp.ne.s32.totalorder %s139, %s140
      %p149 = scmp.eq.s32.totalorder %s29, 0
      %p150 = por %p148, %p149
      %p151 = scmp.ne.s32.totalorder %s139, %s140
      %p152 = scmp.eq.s32.totalorder %s30, 1
      %p153 = por %p151, %p152
      %p155 = scmp.ne.s32.totalorder %s140, %s154
      %p156 = scmp.eq.s32.totalorder %s30, 0
      %p157 = por %p155, %p156
      %s159 = sadd.s32 %s158, 1
      %p162 = scmp.eq.s32.totalorder %s24, 1
      %p163 = scmp.ne.s32.totalorder %s158, %s160
      %p164 = scmp.eq.s32.totalorder %s24, 0
      %p165 = por %p163, %p164
      %p166 = scmp.ne.s32.totalorder %s158, %s160
      %p167 = scmp.eq.s32.totalorder %s29, 1
      %p168 = por %p166, %p167
      %p169 = scmp.ne.s32.totalorder %s160, %s161
      %p170 = scmp.eq.s32.totalorder %s29, 0
      %p171 = por %p169, %p170
      %p172 = scmp.ne.s32.totalorder %s160, %s161
      %p173 = scmp.eq.s32.totalorder %s30, 1
      %p174 = por %p172, %p173
      %p176 = scmp.ne.s32.totalorder %s161, %s175
      %p177 = scmp.eq.s32.totalorder %s30, 0
      %p178 = por %p176, %p177
      %s180 = sadd.s32 %s179, 1
      %p183 = scmp.eq.s32.totalorder %s24, 1
      %p184 = scmp.ne.s32.totalorder %s179, %s181
      %p185 = scmp.eq.s32.totalorder %s24, 0
      %p186 = por %p184, %p185
      %p187 = scmp.ne.s32.totalorder %s179, %s181
      %p188 = scmp.eq.s32.totalorder %s29, 1
      %p189 = por %p187, %p188
      %p190 = scmp.ne.s32.totalorder %s181, %s182
      %p191 = scmp.eq.s32.totalorder %s29, 0
      %p192 = por %p190, %p191
      %p193 = scmp.ne.s32.totalorder %s181, %s182
      %p194 = scmp.eq.s32.totalorder %s30, 1
      %p195 = por %p193, %p194
      %p197 = scmp.ne.s32.totalorder %s182, %s196
      %p198 = scmp.eq.s32.totalorder %s30, 0
      %p199 = por %p197, %p198
      %s201 = sadd.s32 %s200, 1
      %p204 = scmp.eq.s32.totalorder %s24, 1
      %p205 = scmp.ne.s32.totalorder %s200, %s202
      %p206 = scmp.eq.s32.totalorder %s24, 0
      %p207 = por %p205, %p206
      %p208 = scmp.ne.s32.totalorder %s200, %s202
      %p209 = scmp.eq.s32.totalorder %s29, 1
      %p210 = por %p208, %p209
      %p211 = scmp.ne.s32.totalorder %s202, %s203
      %p212 = scmp.eq.s32.totalorder %s29, 0
      %p213 = por %p211, %p212
      %p214 = scmp.ne.s32.totalorder %s202, %s203
      %p215 = scmp.eq.s32.totalorder %s30, 1
      %p216 = por %p214, %p215
      %p218 = scmp.ne.s32.totalorder %s203, %s217
      %p219 = scmp.eq.s32.totalorder %s30, 0
      %p220 = por %p218, %p219
      %s221 = ssub.s32 %s24, %s31
      %p222 = scmp.eq.s32.totalorder %s221, 0
      %s224 = sadd.s32 %s223, 1
      %s225 = scalar_select %p222, %s223, %s224
      %p228 = pneg %p222
      %p229 = scmp.eq.s32.totalorder %s24, 1
      %p230 = por %p228, %p229
      %p231 = scmp.ne.s32.totalorder %s223, %s226
      %p232 = scmp.eq.s32.totalorder %s24, 0
      %p233 = por %p231, %p232
      %p234 = scmp.ne.s32.totalorder %s223, %s226
      %p235 = scmp.eq.s32.totalorder %s29, 1
      %p236 = por %p234, %p235
      %p237 = scmp.ne.s32.totalorder %s226, %s227
      %p238 = scmp.eq.s32.totalorder %s29, 0
      %p239 = por %p237, %p238
      %p240 = scmp.ne.s32.totalorder %s226, %s227
      %p241 = scmp.eq.s32.totalorder %s30, 1
      %p242 = por %p240, %p241
      %p244 = scmp.ne.s32.totalorder %s227, %s243
      %p245 = scmp.eq.s32.totalorder %s30, 0
      %p246 = por %p244, %p245
      %s247 = ssub.s32 %s24, %s31
      %p248 = scmp.eq.s32.totalorder %s247, 0
      %s250 = sadd.s32 %s249, 1
      %s251 = scalar_select %p248, %s249, %s250
      %p254 = pneg %p248
      %p255 = scmp.eq.s32.totalorder %s24, 1
      %p256 = por %p254, %p255
      %p257 = scmp.ne.s32.totalorder %s249, %s252
      %p258 = scmp.eq.s32.totalorder %s24, 0
      %p259 = por %p257, %p258
      %p260 = scmp.ne.s32.totalorder %s249, %s252
      %p261 = scmp.eq.s32.totalorder %s29, 1
      %p262 = por %p260, %p261
      %p263 = scmp.ne.s32.totalorder %s252, %s253
      %p264 = scmp.eq.s32.totalorder %s29, 0
      %p265 = por %p263, %p264
      %p266 = scmp.ne.s32.totalorder %s252, %s253
      %p267 = scmp.eq.s32.totalorder %s30, 1
      %p268 = por %p266, %p267
      %p270 = scmp.ne.s32.totalorder %s253, %s269
      %p271 = scmp.eq.s32.totalorder %s30, 0
      %p272 = por %p270, %p271
      %p273 = scmp.le.s32.totalorder 1, %s24
      %p274 = scmp.lt.s32.totalorder %s24, 3
      %p275 = pnand %p273, %p274
      %p276 = pneg %p275
      // Predicated region
      $region9: #{tpu_custom_call.1} parent=5 // pred_check
        _
      $region10: #{tpu_custom_call.1} parent=5 // pred_check_branch
        %278 = sbr.rel (%p275) target = $region12
      $region11: #{tpu_custom_call.1} parent=5 // pred_region
        %s279 = ssub.s32 %s24, 1
        // Predicated region
        $region13: #{tpu_custom_call.1} parent=11 // pred_check
          %p280 = pneg %p45
        $region14: #{tpu_custom_call.1} parent=11 // pred_check_branch
          %282 = sbr.rel (%p280) target = $region16
        $region15: #{tpu_custom_call.1} parent=11 // pred_region
          %s284 = ssub.s32 1024, 1024
          %285 = vsyncadd [#allocation3], %s284
          %s286 = sshll.u32 [#allocation2], 4
          %s287 = int_to_ptr.vmem [resolvable:$true] %s286
          %292 = dma.hbm_to_vmem [thread:$0]  %s0, 1024, %s287, [#allocation3], 64, 64, 4
        $region16: #{tpu_custom_call.1} parent=11 // pred_fallthru
          _
        // Predicated region
        $region17: #{tpu_custom_call.1} parent=11 // pred_check
          %p293 = pneg %p66
        $region18: #{tpu_custom_call.1} parent=11 // pred_check_branch
          %295 = sbr.rel (%p293) target = $region20
        $region19: #{tpu_custom_call.1} parent=11 // pred_region
          %s297 = ssub.s32 1024, 1024
          %298 = vsyncadd [#allocation6], %s297
          %s299 = sshll.u32 [#allocation5], 4
          %s300 = int_to_ptr.vmem [resolvable:$true] %s299
          %305 = dma.hbm_to_vmem [thread:$0]  %s1, 1024, %s300, [#allocation6], 64, 64, 4
        $region20: #{tpu_custom_call.1} parent=11 // pred_fallthru
          _
        // Predicated region
        $region21: #{tpu_custom_call.1} parent=11 // pred_check
          %p306 = pneg %p87
        $region22: #{tpu_custom_call.1} parent=11 // pred_check_branch
          %308 = sbr.rel (%p306) target = $region24
        $region23: #{tpu_custom_call.1} parent=11 // pred_region
          %s310 = ssub.s32 1024, 1024
          %311 = vsyncadd [#allocation6], %s310
          %s312 = sshll.u32 [#allocation7], 4
          %s313 = int_to_ptr.vmem [resolvable:$true] %s312
          %318 = dma.hbm_to_vmem [thread:$0]  %s2, 1024, %s313, [#allocation6], 64, 64, 4
        $region24: #{tpu_custom_call.1} parent=11 // pred_fallthru
          _
        // Predicated region
        $region25: #{tpu_custom_call.1} parent=11 // pred_check
          %p319 = pneg %p108
        $region26: #{tpu_custom_call.1} parent=11 // pred_check_branch
          %321 = sbr.rel (%p319) target = $region28
        $region27: #{tpu_custom_call.1} parent=11 // pred_region
          %s323 = ssub.s32 512, 512
          %324 = vsyncadd [#allocation9], %s323
          %s325 = sshll.u32 [#allocation8], 4
          %s326 = int_to_ptr.vmem [resolvable:$true] %s325
          %331 = dma.hbm_to_vmem [thread:$0]  %s3, 512, %s326, [#allocation9], 64, 64, 4
        $region28: #{tpu_custom_call.1} parent=11 // pred_fallthru
          _
        // Predicated region
        $region29: #{tpu_custom_call.1} parent=11 // pred_check
          %p332 = pneg %p129
        $region30: #{tpu_custom_call.1} parent=11 // pred_check_branch
          %334 = sbr.rel (%p332) target = $region32
        $region31: #{tpu_custom_call.1} parent=11 // pred_region
          %s336 = ssub.s32 512, 512
          %337 = vsyncadd [#allocation9], %s336
          %s338 = sshll.u32 [#allocation10], 4
          %s339 = int_to_ptr.vmem [resolvable:$true] %s338
          %344 = dma.hbm_to_vmem [thread:$0]  %s4, 512, %s339, [#allocation9], 64, 64, 4
        $region32: #{tpu_custom_call.1} parent=11 // pred_fallthru
          _
        // Predicated region
        $region33: #{tpu_custom_call.1} parent=11 // pred_check
          %p345 = pneg %p150
        $region34: #{tpu_custom_call.1} parent=11 // pred_check_branch
          %347 = sbr.rel (%p345) target = $region36
        $region35: #{tpu_custom_call.1} parent=11 // pred_region
          %s349 = ssub.s32 512, 512
          %350 = vsyncadd [#allocation12], %s349
          %s351 = sshll.u32 [#allocation11], 4
          %s352 = int_to_ptr.vmem [resolvable:$true] %s351
          %357 = dma.hbm_to_vmem [thread:$0]  %s5, 512, %s352, [#allocation12], 64, 64, 4
        $region36: #{tpu_custom_call.1} parent=11 // pred_fallthru
          _
        // Predicated region
        $region37: #{tpu_custom_call.1} parent=11 // pred_check
          %p358 = pneg %p171
        $region38: #{tpu_custom_call.1} parent=11 // pred_check_branch
          %360 = sbr.rel (%p358) target = $region40
        $region39: #{tpu_custom_call.1} parent=11 // pred_region
          %s362 = ssub.s32 512, 512
          %363 = vsyncadd [#allocation12], %s362
          %s364 = sshll.u32 [#allocation13], 4
          %s365 = int_to_ptr.vmem [resolvable:$true] %s364
          %370 = dma.hbm_to_vmem [thread:$0]  %s6, 512, %s365, [#allocation12], 64, 64, 4
        $region40: #{tpu_custom_call.1} parent=11 // pred_fallthru
          _
        // Predicated region
        $region41: #{tpu_custom_call.1} parent=11 // pred_check
          %p371 = pneg %p192
        $region42: #{tpu_custom_call.1} parent=11 // pred_check_branch
          %373 = sbr.rel (%p371) target = $region44
        $region43: #{tpu_custom_call.1} parent=11 // pred_region
          _
        $region44: #{tpu_custom_call.1} parent=11 // pred_fallthru
          _
        // Predicated region
        $region45: #{tpu_custom_call.1} parent=11 // pred_check
          %p374 = pneg %p213
        $region46: #{tpu_custom_call.1} parent=11 // pred_check_branch
          %376 = sbr.rel (%p374) target = $region48
        $region47: #{tpu_custom_call.1} parent=11 // pred_region
          %s378 = ssub.s32 256, 256
          %379 = vsyncadd [#allocation15], %s378
          %s380 = sshll.u32 [#allocation14], 4
          %s381 = int_to_ptr.vmem [resolvable:$true] %s380
          %386 = dma.hbm_to_vmem [thread:$0]  %s8, 256, %s381, [#allocation15], 128, 128, 8
        $region48: #{tpu_custom_call.1} parent=11 // pred_fallthru
          _
      $region12: #{tpu_custom_call.1} parent=5 // pred_fallthru
        _
      %p387 = scmp.lt.s32.totalorder %s24, 2
      // Predicated region
      $region49: #{tpu_custom_call.1} parent=5 // pred_check
        %p388 = pneg %p387
      $region50: #{tpu_custom_call.1} parent=5 // pred_check_branch
        %390 = sbr.rel (%p388) target = $region52
      $region51: #{tpu_custom_call.1} parent=5 // pred_region
        // Predicated region
        $region53: #{tpu_custom_call.1} parent=51 // pred_check
          %p391 = pneg %p233
        $region54: #{tpu_custom_call.1} parent=51 // pred_check_branch
          %393 = sbr.rel (%p391) target = $region56
        $region55: #{tpu_custom_call.1} parent=51 // pred_region
          %s394 = sand.u32 %s24, 1
          %s395 = scalar_lea.sflag [#allocation3], %s394
          %s396 = sand.u32 %s223, 1
          %s397 = smul.addr %s396, 32
          %s398 = scalar_lea.vmem [#allocation16], %s397
          %s399 = smul.u32 8, %s24
          %s401 = ssub.s32 512, 512
          %402 = vsyncadd %s395, %s401
          %s403 = smul.addr %s399, 64
          %s404 = scalar_lea.hbm %s9, %s403
          %s405 = sshll.u32 %s398, 4
          %s406 = int_to_ptr.vmem [resolvable:$true] %s405
          %411 = dma.hbm_to_vmem [thread:$0]  %s404, 512, %s406, %s395, 64, 64, 4
        $region56: #{tpu_custom_call.1} parent=51 // pred_fallthru
          _
      $region52: #{tpu_custom_call.1} parent=5 // pred_fallthru
        _
      %p412 = scmp.le.s32.totalorder 1, %s24
      %p413 = scmp.lt.s32.totalorder %s24, 3
      %p414 = pnand %p412, %p413
      %p415 = pneg %p414
      // Predicated region
      $region57: #{tpu_custom_call.1} parent=5 // pred_check
        _
      $region58: #{tpu_custom_call.1} parent=5 // pred_check_branch
        %417 = sbr.rel (%p414) target = $region60
      $region59: #{tpu_custom_call.1} parent=5 // pred_region
        %s418 = ssub.s32 %s24, 1
        // Predicated region
        $region61: #{tpu_custom_call.1} parent=59 // pred_check
          %p419 = pneg %p45
        $region62: #{tpu_custom_call.1} parent=59 // pred_check_branch
          %421 = sbr.rel (%p419) target = $region64
        $region63: #{tpu_custom_call.1} parent=59 // pred_region
          %422 = dma.done [#allocation3], 1024
        $region64: #{tpu_custom_call.1} parent=59 // pred_fallthru
          _
        // Predicated region
        $region65: #{tpu_custom_call.1} parent=59 // pred_check
          %p423 = pneg %p66
        $region66: #{tpu_custom_call.1} parent=59 // pred_check_branch
          %425 = sbr.rel (%p423) target = $region68
        $region67: #{tpu_custom_call.1} parent=59 // pred_region
          %426 = dma.done [#allocation6], 1024
        $region68: #{tpu_custom_call.1} parent=59 // pred_fallthru
          _
        // Predicated region
        $region69: #{tpu_custom_call.1} parent=59 // pred_check
          %p427 = pneg %p87
        $region70: #{tpu_custom_call.1} parent=59 // pred_check_branch
          %429 = sbr.rel (%p427) target = $region72
        $region71: #{tpu_custom_call.1} parent=59 // pred_region
          %430 = dma.done [#allocation6], 1024
        $region72: #{tpu_custom_call.1} parent=59 // pred_fallthru
          _
        // Predicated region
        $region73: #{tpu_custom_call.1} parent=59 // pred_check
          %p431 = pneg %p108
        $region74: #{tpu_custom_call.1} parent=59 // pred_check_branch
          %433 = sbr.rel (%p431) target = $region76
        $region75: #{tpu_custom_call.1} parent=59 // pred_region
          %434 = dma.done [#allocation9], 512
        $region76: #{tpu_custom_call.1} parent=59 // pred_fallthru
          _
        // Predicated region
        $region77: #{tpu_custom_call.1} parent=59 // pred_check
          %p435 = pneg %p129
        $region78: #{tpu_custom_call.1} parent=59 // pred_check_branch
          %437 = sbr.rel (%p435) target = $region80
        $region79: #{tpu_custom_call.1} parent=59 // pred_region
          %438 = dma.done [#allocation9], 512
        $region80: #{tpu_custom_call.1} parent=59 // pred_fallthru
          _
        // Predicated region
        $region81: #{tpu_custom_call.1} parent=59 // pred_check
          %p439 = pneg %p150
        $region82: #{tpu_custom_call.1} parent=59 // pred_check_branch
          %441 = sbr.rel (%p439) target = $region84
        $region83: #{tpu_custom_call.1} parent=59 // pred_region
          %442 = dma.done [#allocation12], 512
        $region84: #{tpu_custom_call.1} parent=59 // pred_fallthru
          _
        // Predicated region
        $region85: #{tpu_custom_call.1} parent=59 // pred_check
          %p443 = pneg %p171
        $region86: #{tpu_custom_call.1} parent=59 // pred_check_branch
          %445 = sbr.rel (%p443) target = $region88
        $region87: #{tpu_custom_call.1} parent=59 // pred_region
          %446 = dma.done [#allocation12], 512
        $region88: #{tpu_custom_call.1} parent=59 // pred_fallthru
          _
        // Predicated region
        $region89: #{tpu_custom_call.1} parent=59 // pred_check
          %p447 = pneg %p213
        $region90: #{tpu_custom_call.1} parent=59 // pred_check_branch
          %449 = sbr.rel (%p447) target = $region92
        $region91: #{tpu_custom_call.1} parent=59 // pred_region
          %450 = dma.done [#allocation15], 256
        $region92: #{tpu_custom_call.1} parent=59 // pred_fallthru
          _
        %s451 = sand.u32 %s29, 1
        %s452 = scalar_lea.sflag [#allocation3], %s451
        %s453 = sand.u32 %s226, 1
        %s454 = smul.addr %s453, 32
        %s455 = scalar_lea.vmem [#allocation16], %s454
        // Predicated region
        $region93: #{tpu_custom_call.1} parent=59 // pred_check
          %p456 = pneg %p239
        $region94: #{tpu_custom_call.1} parent=59 // pred_check_branch
          %458 = sbr.rel (%p456) target = $region96
        $region95: #{tpu_custom_call.1} parent=59 // pred_region
          %459 = dma.done %s452, 512
        $region96: #{tpu_custom_call.1} parent=59 // pred_fallthru
          _
        %p460 = pneg %p45
        %p461 = pneg %p42
        %p462 = pneg %p66
        %p463 = pneg %p63
        %p464 = pneg %p87
        %p465 = pneg %p84
        %p466 = pneg %p108
        %p467 = pneg %p105
        %p468 = pneg %p129
        %p469 = pneg %p126
        %p470 = pneg %p150
        %p471 = pneg %p147
        %p472 = pneg %p171
        %p473 = pneg %p168
        %p474 = pneg %p192
        %p475 = pneg %p189
        %p476 = pneg %p213
        %p477 = pneg %p210
        %s478 = sand.u32 %s29, 1
        %s479 = scalar_lea.sflag [#allocation3], %s478
        %s480 = sand.u32 %s226, 1
        %s481 = smul.addr %s480, 32
        %s482 = scalar_lea.vmem [#allocation16], %s481
        %p483 = pneg %p239
        %p484 = pneg %p236
        %p485 = pneg %p265
        %p486 = pneg %p262
        %s487 = sand.u32 %s252, 1
        %s488 = scalar_lea.sflag [#allocation4], %s487
        %s489 = sand.u32 %s252, 1
        %s490 = smul.addr %s489, 64
        %s491 = scalar_lea.vmem [#allocation17], %s490
        %s492 = smul.u32 8, %s29
        %s493 = smul.u32 8, %s29
        %v495 = vld [vmem:[%s455] sm:$0xf]
        %v496 = vld [vmem:[%s455 + $0x4] sm:$0xf]
        %v497 = vld [vmem:[%s455 + $0x8] sm:$0xf]
        %v498 = vld [vmem:[%s455 + $0xc] sm:$0xf]
        %v499 = vld [vmem:[%s455 + $0x10] sm:$0xf]
        %v500 = vld [vmem:[%s455 + $0x14] sm:$0xf]
        %v501 = vld [vmem:[%s455 + $0x18] sm:$0xf]
        %v502 = vld [vmem:[%s455 + $0x1c] sm:$0xf]
        %v503 = vld [vmem:[#allocation2] sm:$0xf]
        %v504 = vld [vmem:[#allocation2 + $0x4] sm:$0xf]
        %v505 = vld [vmem:[#allocation2 + $0x8] sm:$0xf]
        %v506 = vld [vmem:[#allocation2 + $0xc] sm:$0xf]
        %v507 = vld [vmem:[#allocation2 + $0x10] sm:$0xf]
        %v508 = vld [vmem:[#allocation2 + $0x14] sm:$0xf]
        %v509 = vld [vmem:[#allocation2 + $0x18] sm:$0xf]
        %v510 = vld [vmem:[#allocation2 + $0x1c] sm:$0xf]
        %v511 = vld [vmem:[#allocation2 + $0x20] sm:$0xf]
        %v512 = vld [vmem:[#allocation2 + $0x24] sm:$0xf]
        %v513 = vld [vmem:[#allocation2 + $0x28] sm:$0xf]
        %v514 = vld [vmem:[#allocation2 + $0x2c] sm:$0xf]
        %v515 = vld [vmem:[#allocation2 + $0x30] sm:$0xf]
        %v516 = vld [vmem:[#allocation2 + $0x34] sm:$0xf]
        %v517 = vld [vmem:[#allocation2 + $0x38] sm:$0xf]
        %v518 = vld [vmem:[#allocation2 + $0x3c] sm:$0xf]
        %v519 = vld [vmem:[#allocation5] sm:$0xf]
        %v520 = vld [vmem:[#allocation5 + $0x4] sm:$0xf]
        %v521 = vld [vmem:[#allocation5 + $0x8] sm:$0xf]
        %v522 = vld [vmem:[#allocation5 + $0xc] sm:$0xf]
        %v523 = vld [vmem:[#allocation5 + $0x10] sm:$0xf]
        %v524 = vld [vmem:[#allocation5 + $0x14] sm:$0xf]
        %v525 = vld [vmem:[#allocation5 + $0x18] sm:$0xf]
        %v526 = vld [vmem:[#allocation5 + $0x1c] sm:$0xf]
        %v527 = vld [vmem:[#allocation5 + $0x20] sm:$0xf]
        %v528 = vld [vmem:[#allocation5 + $0x24] sm:$0xf]
        %v529 = vld [vmem:[#allocation5 + $0x28] sm:$0xf]
        %v530 = vld [vmem:[#allocation5 + $0x2c] sm:$0xf]
        %v531 = vld [vmem:[#allocation5 + $0x30] sm:$0xf]
        %v532 = vld [vmem:[#allocation5 + $0x34] sm:$0xf]
        %v533 = vld [vmem:[#allocation5 + $0x38] sm:$0xf]
        %v534 = vld [vmem:[#allocation5 + $0x3c] sm:$0xf]
        %v535 = vld [vmem:[#allocation7] sm:$0xf]
        %v536 = vld [vmem:[#allocation7 + $0x4] sm:$0xf]
        %v537 = vld [vmem:[#allocation7 + $0x8] sm:$0xf]
        %v538 = vld [vmem:[#allocation7 + $0xc] sm:$0xf]
        %v539 = vld [vmem:[#allocation7 + $0x10] sm:$0xf]
        %v540 = vld [vmem:[#allocation7 + $0x14] sm:$0xf]
        %v541 = vld [vmem:[#allocation7 + $0x18] sm:$0xf]
        %v542 = vld [vmem:[#allocation7 + $0x1c] sm:$0xf]
        %v543 = vld [vmem:[#allocation7 + $0x20] sm:$0xf]
        %v544 = vld [vmem:[#allocation7 + $0x24] sm:$0xf]
        %v545 = vld [vmem:[#allocation7 + $0x28] sm:$0xf]
        %v546 = vld [vmem:[#allocation7 + $0x2c] sm:$0xf]
        %v547 = vld [vmem:[#allocation7 + $0x30] sm:$0xf]
        %v548 = vld [vmem:[#allocation7 + $0x34] sm:$0xf]
        %v549 = vld [vmem:[#allocation7 + $0x38] sm:$0xf]
        %v550 = vld [vmem:[#allocation7 + $0x3c] sm:$0xf]
        %v551 = vld [vmem:[#allocation8] sm:$0xf]
        %v552 = vld [vmem:[#allocation8 + $0x4] sm:$0xf]
        %v553 = vld [vmem:[#allocation8 + $0x8] sm:$0xf]
        %v554 = vld [vmem:[#allocation8 + $0xc] sm:$0xf]
        %v555 = vld [vmem:[#allocation8 + $0x10] sm:$0xf]
        %v556 = vld [vmem:[#allocation8 + $0x14] sm:$0xf]
        %v557 = vld [vmem:[#allocation8 + $0x18] sm:$0xf]
        %v558 = vld [vmem:[#allocation8 + $0x1c] sm:$0xf]
        %v559 = vld [vmem:[#allocation10] sm:$0xf]
        %v560 = vld [vmem:[#allocation10 + $0x4] sm:$0xf]
        %v561 = vld [vmem:[#allocation10 + $0x8] sm:$0xf]
        %v562 = vld [vmem:[#allocation10 + $0xc] sm:$0xf]
        %v563 = vld [vmem:[#allocation10 + $0x10] sm:$0xf]
        %v564 = vld [vmem:[#allocation10 + $0x14] sm:$0xf]
        %v565 = vld [vmem:[#allocation10 + $0x18] sm:$0xf]
        %v566 = vld [vmem:[#allocation10 + $0x1c] sm:$0xf]
        %v567 = vld [vmem:[#allocation11] sm:$0xf]
        %v568 = vld [vmem:[#allocation11 + $0x4] sm:$0xf]
        %v569 = vld [vmem:[#allocation11 + $0x8] sm:$0xf]
        %v570 = vld [vmem:[#allocation11 + $0xc] sm:$0xf]
        %v571 = vld [vmem:[#allocation11 + $0x10] sm:$0xf]
        %v572 = vld [vmem:[#allocation11 + $0x14] sm:$0xf]
        %v573 = vld [vmem:[#allocation11 + $0x18] sm:$0xf]
        %v574 = vld [vmem:[#allocation11 + $0x1c] sm:$0xf]
        %v575 = vld [vmem:[#allocation13] sm:$0xf]
        %v576 = vld [vmem:[#allocation13 + $0x4] sm:$0xf]
        %v577 = vld [vmem:[#allocation13 + $0x8] sm:$0xf]
        %v578 = vld [vmem:[#allocation13 + $0xc] sm:$0xf]
        %v579 = vld [vmem:[#allocation13 + $0x10] sm:$0xf]
        %v580 = vld [vmem:[#allocation13 + $0x14] sm:$0xf]
        %v581 = vld [vmem:[#allocation13 + $0x18] sm:$0xf]
        %v582 = vld [vmem:[#allocation13 + $0x1c] sm:$0xf]
        %v591 = vunpack.c.l.b16 %v495
        %v592 = vunpack.c.l.b16 %v496
        %v593 = vunpack.c.l.b16 %v497
        %v594 = vunpack.c.l.b16 %v498
        %v595 = vunpack.c.l.b16 %v499
        %v596 = vunpack.c.l.b16 %v500
        %v597 = vunpack.c.l.b16 %v501
        %v598 = vunpack.c.l.b16 %v502
        %v599 = vpack.c.b16 %v592, %v591
        %v600 = vpack.c.b16 %v594, %v593
        %v601 = vpack.c.b16 %v596, %v595
        %v602 = vpack.c.b16 %v598, %v597
        %v623 = vunpack.c.l.b16 %v503
        %v624 = vunpack.c.l.b16 %v504
        %v625 = vunpack.c.l.b16 %v505
        %v626 = vunpack.c.l.b16 %v506
        %v627 = vunpack.c.l.b16 %v507
        %v628 = vunpack.c.l.b16 %v508
        %v629 = vunpack.c.l.b16 %v509
        %v630 = vunpack.c.l.b16 %v510
        %v631 = vunpack.c.l.b16 %v511
        %v632 = vunpack.c.l.b16 %v512
        %v633 = vunpack.c.l.b16 %v513
        %v634 = vunpack.c.l.b16 %v514
        %v635 = vunpack.c.l.b16 %v515
        %v636 = vunpack.c.l.b16 %v516
        %v637 = vunpack.c.l.b16 %v517
        %v638 = vunpack.c.l.b16 %v518
        %v639 = vpack.c.b16 %v624, %v623
        %v640 = vpack.c.b16 %v626, %v625
        %v641 = vpack.c.b16 %v628, %v627
        %v642 = vpack.c.b16 %v630, %v629
        %v643 = vpack.c.b16 %v632, %v631
        %v644 = vpack.c.b16 %v634, %v633
        %v645 = vpack.c.b16 %v636, %v635
        %v646 = vpack.c.b16 %v638, %v637
        %655 = vmatprep.subr.bf16.mxu0 0
        %656 = vmatpush1.bf16.msra.mxu0 %v639
        %657 = vmatprep.subr.bf16.mxu0 0
        %658 = vmatpush1.bf16.msra.mxu0 %v640
        %659 = vmatprep.subr.bf16.mxu0 0
        %660 = vmatpush1.bf16.msra.mxu0 %v641
        %661 = vmatprep.subr.bf16.mxu0 0
        %662 = vmatpush1.bf16.msra.mxu0 %v642
        %663 = vmatprep.subr.bf16.mxu0 0
        %664 = vmatpush1.bf16.msra.mxu0 %v643
        %665 = vmatprep.subr.bf16.mxu0 0
        %666 = vmatpush1.bf16.msra.mxu0 %v644
        %667 = vmatprep.subr.bf16.mxu0 0
        %668 = vmatpush1.bf16.msra.mxu0 %v645
        %669 = vmatprep.subr.bf16.mxu0 0
        %670 = vmatpush1.bf16.msra.mxu0 %v646
        %671 = vmatprep.subr.bf16.mxu0 0
        %672 = vmatpush1.bf16.msra.mxu0 0
        %673 = vmatprep.subr.bf16.mxu0 0
        %674 = vmatpush1.bf16.msra.mxu0 0
        %675 = vmatprep.subr.bf16.mxu0 0
        %676 = vmatpush1.bf16.msra.mxu0 0
        %677 = vmatprep.subr.bf16.mxu0 0
        %678 = vmatpush1.bf16.msra.mxu0 0
        %679 = vmatprep.subr.bf16.mxu0 0
        %680 = vmatpush1.bf16.msra.mxu0 0
        %681 = vmatprep.subr.bf16.mxu0 0
        %682 = vmatpush1.bf16.msra.mxu0 0
        %683 = vmatprep.subr.bf16.mxu0 0
        %684 = vmatpush1.bf16.msra.mxu0 0
        %685 = vmatprep.subr.bf16.mxu0 0
        %686 = vmatpush1.bf16.msra.mxu0 0
        %687 = vmatprep.mubr.bf16.mxu0 0
        %688 = vmatmul.mubr.bf16.gmra.mrb[0].mxu0 %v599
        %v689 = vpop.f32.mrb[0].mxu0
        %v690 = vadd.f32 0.0, %v689
        %v691 = vpop.f32.mrb[0].mxu0
        %v692 = vpop.f32.mrb[0].mxu0
        %v693 = vadd.f32 0.0, %v692
        %v694 = vpop.f32.mrb[0].mxu0
        %695 = vmatprep.mubr.bf16.mxu0 0
        %696 = vmatmul.mubr.bf16.gmra.mrb[0].mxu0 %v600
        %v697 = vpop.f32.mrb[0].mxu0
        %v698 = vadd.f32 0.0, %v697
        %v699 = vpop.f32.mrb[0].mxu0
        %v700 = vpop.f32.mrb[0].mxu0
        %v701 = vadd.f32 0.0, %v700
        %v702 = vpop.f32.mrb[0].mxu0
        %703 = vmatprep.mubr.bf16.mxu0 0
        %704 = vmatmul.mubr.bf16.gmra.mrb[0].mxu0 %v601
        %v705 = vpop.f32.mrb[0].mxu0
        %v706 = vadd.f32 0.0, %v705
        %v707 = vpop.f32.mrb[0].mxu0
        %v708 = vpop.f32.mrb[0].mxu0
        %v709 = vadd.f32 0.0, %v708
        %v710 = vpop.f32.mrb[0].mxu0
        %711 = vmatprep.mubr.bf16.mxu0 0
        %712 = vmatmul.mubr.bf16.gmra.mrb[0].mxu0 %v602
        %v713 = vpop.f32.mrb[0].mxu0
        %v714 = vadd.f32 0.0, %v713
        %v715 = vpop.f32.mrb[0].mxu0
        %v716 = vpop.f32.mrb[0].mxu0
        %v717 = vadd.f32 0.0, %v716
        %v718 = vpop.f32.mrb[0].mxu0
        %719 = vdwg.mxu0
        %v736 = vunpack.c.l.b16 %v519
        %v737 = vunpack.c.l.b16 %v520
        %v738 = vunpack.c.l.b16 %v521
        %v739 = vunpack.c.l.b16 %v522
        %v740 = vunpack.c.l.b16 %v523
        %v741 = vunpack.c.l.b16 %v524
        %v742 = vunpack.c.l.b16 %v525
        %v743 = vunpack.c.l.b16 %v526
        %v744 = vunpack.c.l.b16 %v527
        %v745 = vunpack.c.l.b16 %v528
        %v746 = vunpack.c.l.b16 %v529
        %v747 = vunpack.c.l.b16 %v530
        %v748 = vunpack.c.l.b16 %v531
        %v749 = vunpack.c.l.b16 %v532
        %v750 = vunpack.c.l.b16 %v533
        %v751 = vunpack.c.l.b16 %v534
        %v752 = vpack.c.b16 %v737, %v736
        %v753 = vpack.c.b16 %v739, %v738
        %v754 = vpack.c.b16 %v741, %v740
        %v755 = vpack.c.b16 %v743, %v742
        %v756 = vpack.c.b16 %v745, %v744
        %v757 = vpack.c.b16 %v747, %v746
        %v758 = vpack.c.b16 %v749, %v748
        %v759 = vpack.c.b16 %v751, %v750
        %768 = vmatprep.subr.bf16.mxu0 0
        %769 = vmatpush1.bf16.msra.mxu0 %v752
        %770 = vmatprep.subr.bf16.mxu0 0
        %771 = vmatpush1.bf16.msra.mxu0 %v753
        %772 = vmatprep.subr.bf16.mxu0 0
        %773 = vmatpush1.bf16.msra.mxu0 %v754
        %774 = vmatprep.subr.bf16.mxu0 0
        %775 = vmatpush1.bf16.msra.mxu0 %v755
        %776 = vmatprep.subr.bf16.mxu0 0
        %777 = vmatpush1.bf16.msra.mxu0 %v756
        %778 = vmatprep.subr.bf16.mxu0 0
        %779 = vmatpush1.bf16.msra.mxu0 %v757
        %780 = vmatprep.subr.bf16.mxu0 0
        %781 = vmatpush1.bf16.msra.mxu0 %v758
        %782 = vmatprep.subr.bf16.mxu0 0
        %783 = vmatpush1.bf16.msra.mxu0 %v759
        %784 = vmatprep.subr.bf16.mxu0 0
        %785 = vmatpush1.bf16.msra.mxu0 0
        %786 = vmatprep.subr.bf16.mxu0 0
        %787 = vmatpush1.bf16.msra.mxu0 0
        %788 = vmatprep.subr.bf16.mxu0 0
        %789 = vmatpush1.bf16.msra.mxu0 0
        %790 = vmatprep.subr.bf16.mxu0 0
        %791 = vmatpush1.bf16.msra.mxu0 0
        %792 = vmatprep.subr.bf16.mxu0 0
        %793 = vmatpush1.bf16.msra.mxu0 0
        %794 = vmatprep.subr.bf16.mxu0 0
        %795 = vmatpush1.bf16.msra.mxu0 0
        %796 = vmatprep.subr.bf16.mxu0 0
        %797 = vmatpush1.bf16.msra.mxu0 0
        %798 = vmatprep.subr.bf16.mxu0 0
        %799 = vmatpush1.bf16.msra.mxu0 0
        %800 = vmatprep.mubr.bf16.mxu0 0
        %801 = vmatmul.mubr.bf16.gmra.mrb[0].mxu0 %v599
        %v802 = vpop.f32.mrb[0].mxu0
        %v803 = vadd.f32 0.0, %v802
        %v804 = vpop.f32.mrb[0].mxu0
        %v805 = vpop.f32.mrb[0].mxu0
        %v806 = vadd.f32 0.0, %v805
        %v807 = vpop.f32.mrb[0].mxu0
        %808 = vmatprep.mubr.bf16.mxu0 0
        %809 = vmatmul.mubr.bf16.gmra.mrb[0].mxu0 %v600
        %v810 = vpop.f32.mrb[0].mxu0
        %v811 = vadd.f32 0.0, %v810
        %v812 = vpop.f32.mrb[0].mxu0
        %v813 = vpop.f32.mrb[0].mxu0
        %v814 = vadd.f32 0.0, %v813
        %v815 = vpop.f32.mrb[0].mxu0
        %816 = vmatprep.mubr.bf16.mxu0 0
        %817 = vmatmul.mubr.bf16.gmra.mrb[0].mxu0 %v601
        %v818 = vpop.f32.mrb[0].mxu0
        %v819 = vadd.f32 0.0, %v818
        %v820 = vpop.f32.mrb[0].mxu0
        %v821 = vpop.f32.mrb[0].mxu0
        %v822 = vadd.f32 0.0, %v821
        %v823 = vpop.f32.mrb[0].mxu0
        %824 = vmatprep.mubr.bf16.mxu0 0
        %825 = vmatmul.mubr.bf16.gmra.mrb[0].mxu0 %v602
        %v826 = vpop.f32.mrb[0].mxu0
        %v827 = vadd.f32 0.0, %v826
        %v828 = vpop.f32.mrb[0].mxu0
        %v829 = vpop.f32.mrb[0].mxu0
        %v830 = vadd.f32 0.0, %v829
        %v831 = vpop.f32.mrb[0].mxu0
        %832 = vdwg.mxu0
        %v833 = vsub.f32 0.0, %v803
        %v834 = vsub.f32 0.0, %v806
        %v835 = vsub.f32 0.0, %v811
        %v836 = vsub.f32 0.0, %v814
        %v837 = vsub.f32 0.0, %v819
        %v838 = vsub.f32 0.0, %v822
        %v839 = vsub.f32 0.0, %v827
        %v840 = vsub.f32 0.0, %v830
        %v841 = vpack.c.bf16 %v693, %v690
        %v842 = vpack.c.bf16 %v701, %v698
        %v843 = vpack.c.bf16 %v709, %v706
        %v844 = vpack.c.bf16 %v717, %v714
        %v853 = vunpack.c.l.b16 %v551
        %v854 = vunpack.c.l.b16 %v552
        %v855 = vunpack.c.l.b16 %v553
        %v856 = vunpack.c.l.b16 %v554
        %v857 = vunpack.c.l.b16 %v555
        %v858 = vunpack.c.l.b16 %v556
        %v859 = vunpack.c.l.b16 %v557
        %v860 = vunpack.c.l.b16 %v558
        %v861 = vpack.c.b16 %v854, %v853
        %v862 = vpack.c.b16 %v856, %v855
        %v863 = vpack.c.b16 %v858, %v857
        %v864 = vpack.c.b16 %v860, %v859
        %vm865 = vcmask 523264
        %v867 = vsel %vm865, %v861, 0
        %v870 = vsel %vm865, %v862, 0
        %v873 = vsel %vm865, %v863, 0
        %v876 = vsel %vm865, %v864, 0
        %878 = vmatprep.subr.bf16.mxu0 0
        %879 = vmatpush1.bf16.msra.mxu0 %v841
        %880 = vmatprep.subr.bf16.mxu0 0
        %881 = vmatpush1.bf16.msra.mxu0 %v842
        %882 = vmatprep.subr.bf16.mxu0 0
        %883 = vmatpush1.bf16.msra.mxu0 %v843
        %884 = vmatprep.subr.bf16.mxu0 0
        %885 = vmatpush1.bf16.msra.mxu0 %v844
        %886 = vmatprep.subr.bf16.mxu0 0
        %887 = vmatpush1.bf16.msra.mxu0 0
        %888 = vmatprep.subr.bf16.mxu0 0
        %889 = vmatpush1.bf16.msra.mxu0 0
        %890 = vmatprep.subr.bf16.mxu0 0
        %891 = vmatpush1.bf16.msra.mxu0 0
        %892 = vmatprep.subr.bf16.mxu0 0
        %893 = vmatpush1.bf16.msra.mxu0 0
        %894 = vmatprep.subr.bf16.mxu0 0
        %895 = vmatpush1.bf16.msra.mxu0 0
        %896 = vmatprep.subr.bf16.mxu0 0
        %897 = vmatpush1.bf16.msra.mxu0 0
        %898 = vmatprep.subr.bf16.mxu0 0
        %899 = vmatpush1.bf16.msra.mxu0 0
        %900 = vmatprep.subr.bf16.mxu0 0
        %901 = vmatpush1.bf16.msra.mxu0 0
        %902 = vmatprep.subr.bf16.mxu0 0
        %903 = vmatpush1.bf16.msra.mxu0 0
        %904 = vmatprep.subr.bf16.mxu0 0
        %905 = vmatpush1.bf16.msra.mxu0 0
        %906 = vmatprep.subr.bf16.mxu0 0
        %907 = vmatpush1.bf16.msra.mxu0 0
        %908 = vmatprep.subr.bf16.mxu0 0
        %909 = vmatpush1.bf16.msra.mxu0 0
        %910 = vmatprep.mubr.bf16.mxu0 0
        %911 = vmatmul.mubr.bf16.gmra.mrb[0].mxu0 %v867
        %v912 = vpop.f32.mrb[0].mxu0
        %v913 = vadd.f32 0.0, %v912
        %v914 = vpop.f32.mrb[0].mxu0
        %v915 = vpop.f32.mrb[0].mxu0
        %v916 = vadd.f32 0.0, %v915
        %v917 = vpop.f32.mrb[0].mxu0
        %918 = vmatprep.mubr.bf16.mxu0 0
        %919 = vmatmul.mubr.bf16.gmra.mrb[0].mxu0 %v870
        %v920 = vpop.f32.mrb[0].mxu0
        %v921 = vadd.f32 0.0, %v920
        %v922 = vpop.f32.mrb[0].mxu0
        %v923 = vpop.f32.mrb[0].mxu0
        %v924 = vadd.f32 0.0, %v923
        %v925 = vpop.f32.mrb[0].mxu0
        %926 = vmatprep.mubr.bf16.mxu0 0
        %927 = vmatmul.mubr.bf16.gmra.mrb[0].mxu0 %v873
        %v928 = vpop.f32.mrb[0].mxu0
        %v929 = vadd.f32 0.0, %v928
        %v930 = vpop.f32.mrb[0].mxu0
        %v931 = vpop.f32.mrb[0].mxu0
        %v932 = vadd.f32 0.0, %v931
        %v933 = vpop.f32.mrb[0].mxu0
        %934 = vmatprep.mubr.bf16.mxu0 0
        %935 = vmatmul.mubr.bf16.gmra.mrb[0].mxu0 %v876
        %v936 = vpop.f32.mrb[0].mxu0
        %v937 = vadd.f32 0.0, %v936
        %v938 = vpop.f32.mrb[0].mxu0
        %v939 = vpop.f32.mrb[0].mxu0
        %v940 = vadd.f32 0.0, %v939
        %v941 = vpop.f32.mrb[0].mxu0
        %942 = vdwg.mxu0
        %v943 = vpack.c.bf16 %v834, %v833
        %v944 = vpack.c.bf16 %v836, %v835
        %v945 = vpack.c.bf16 %v838, %v837
        %v946 = vpack.c.bf16 %v840, %v839
        %v955 = vunpack.c.l.b16 %v559
        %v956 = vunpack.c.l.b16 %v560
        %v957 = vunpack.c.l.b16 %v561
        %v958 = vunpack.c.l.b16 %v562
        %v959 = vunpack.c.l.b16 %v563
        %v960 = vunpack.c.l.b16 %v564
        %v961 = vunpack.c.l.b16 %v565
        %v962 = vunpack.c.l.b16 %v566
        %v963 = vpack.c.b16 %v956, %v955
        %v964 = vpack.c.b16 %v958, %v957
        %v965 = vpack.c.b16 %v960, %v959
        %v966 = vpack.c.b16 %v962, %v961
        %v968 = vsel %vm865, %v963, 0
        %v971 = vsel %vm865, %v964, 0
        %v974 = vsel %vm865, %v965, 0
        %v977 = vsel %vm865, %v966, 0
        %979 = vmatprep.subr.bf16.mxu0 0
        %980 = vmatpush1.bf16.msra.mxu0 %v943
        %981 = vmatprep.subr.bf16.mxu0 0
        %982 = vmatpush1.bf16.msra.mxu0 %v944
        %983 = vmatprep.subr.bf16.mxu0 0
        %984 = vmatpush1.bf16.msra.mxu0 %v945
        %985 = vmatprep.subr.bf16.mxu0 0
        %986 = vmatpush1.bf16.msra.mxu0 %v946
        %987 = vmatprep.subr.bf16.mxu0 0
        %988 = vmatpush1.bf16.msra.mxu0 0
        %989 = vmatprep.subr.bf16.mxu0 0
        %990 = vmatpush1.bf16.msra.mxu0 0
        %991 = vmatprep.subr.bf16.mxu0 0
        %992 = vmatpush1.bf16.msra.mxu0 0
        %993 = vmatprep.subr.bf16.mxu0 0
        %994 = vmatpush1.bf16.msra.mxu0 0
        %995 = vmatprep.subr.bf16.mxu0 0
        %996 = vmatpush1.bf16.msra.mxu0 0
        %997 = vmatprep.subr.bf16.mxu0 0
        %998 = vmatpush1.bf16.msra.mxu0 0
        %999 = vmatprep.subr.bf16.mxu0 0
        %1000 = vmatpush1.bf16.msra.mxu0 0
        %1001 = vmatprep.subr.bf16.mxu0 0
        %1002 = vmatpush1.bf16.msra.mxu0 0
        %1003 = vmatprep.subr.bf16.mxu0 0
        %1004 = vmatpush1.bf16.msra.mxu0 0
        %1005 = vmatprep.subr.bf16.mxu0 0
        %1006 = vmatpush1.bf16.msra.mxu0 0
        %1007 = vmatprep.subr.bf16.mxu0 0
        %1008 = vmatpush1.bf16.msra.mxu0 0
        %1009 = vmatprep.subr.bf16.mxu0 0
        %1010 = vmatpush1.bf16.msra.mxu0 0
        %1011 = vmatprep.mubr.bf16.mxu0 0
        %1012 = vmatmul.mubr.bf16.gmra.mrb[0].mxu0 %v968
        %v1013 = vpop.f32.mrb[0].mxu0
        %v1014 = vadd.f32 0.0, %v1013
        %v1015 = vpop.f32.mrb[0].mxu0
        %v1016 = vpop.f32.mrb[0].mxu0
        %v1017 = vadd.f32 0.0, %v1016
        %v1018 = vpop.f32.mrb[0].mxu0
        %1019 = vmatprep.mubr.bf16.mxu0 0
        %1020 = vmatmul.mubr.bf16.gmra.mrb[0].mxu0 %v971
        %v1021 = vpop.f32.mrb[0].mxu0
        %v1022 = vadd.f32 0.0, %v1021
        %v1023 = vpop.f32.mrb[0].mxu0
        %v1024 = vpop.f32.mrb[0].mxu0
        %v1025 = vadd.f32 0.0, %v1024
        %v1026 = vpop.f32.mrb[0].mxu0
        %1027 = vmatprep.mubr.bf16.mxu0 0
        %1028 = vmatmul.mubr.bf16.gmra.mrb[0].mxu0 %v974
        %v1029 = vpop.f32.mrb[0].mxu0
        %v1030 = vadd.f32 0.0, %v1029
        %v1031 = vpop.f32.mrb[0].mxu0
        %v1032 = vpop.f32.mrb[0].mxu0
        %v1033 = vadd.f32 0.0, %v1032
        %v1034 = vpop.f32.mrb[0].mxu0
        %1035 = vmatprep.mubr.bf16.mxu0 0
        %1036 = vmatmul.mubr.bf16.gmra.mrb[0].mxu0 %v977
        %v1037 = vpop.f32.mrb[0].mxu0
        %v1038 = vadd.f32 0.0, %v1037
        %v1039 = vpop.f32.mrb[0].mxu0
        %v1040 = vpop.f32.mrb[0].mxu0
        %v1041 = vadd.f32 0.0, %v1040
        %v1042 = vpop.f32.mrb[0].mxu0
        %1043 = vdwg.mxu0
        %v1044 = vadd.f32 %v690, %v833
        %v1045 = vadd.f32 %v693, %v834
        %v1046 = vadd.f32 %v698, %v835
        %v1047 = vadd.f32 %v701, %v836
        %v1048 = vadd.f32 %v706, %v837
        %v1049 = vadd.f32 %v709, %v838
        %v1050 = vadd.f32 %v714, %v839
        %v1051 = vadd.f32 %v717, %v840
        %v1052 = vpack.c.bf16 %v1045, %v1044
        %v1053 = vpack.c.bf16 %v1047, %v1046
        %v1054 = vpack.c.bf16 %v1049, %v1048
        %v1055 = vpack.c.bf16 %v1051, %v1050
        %v1064 = vunpack.c.l.b16 %v567
        %v1065 = vunpack.c.l.b16 %v568
        %v1066 = vunpack.c.l.b16 %v569
        %v1067 = vunpack.c.l.b16 %v570
        %v1068 = vunpack.c.l.b16 %v571
        %v1069 = vunpack.c.l.b16 %v572
        %v1070 = vunpack.c.l.b16 %v573
        %v1071 = vunpack.c.l.b16 %v574
        %v1072 = vpack.c.b16 %v1065, %v1064
        %v1073 = vpack.c.b16 %v1067, %v1066
        %v1074 = vpack.c.b16 %v1069, %v1068
        %v1075 = vpack.c.b16 %v1071, %v1070
        %v1077 = vsel %vm865, %v1072, 0
        %v1080 = vsel %vm865, %v1073, 0
        %v1083 = vsel %vm865, %v1074, 0
        %v1086 = vsel %vm865, %v1075, 0
        %1088 = vmatprep.subr.bf16.mxu0 0
        %1089 = vmatpush1.bf16.msra.mxu0 %v1052
        %1090 = vmatprep.subr.bf16.mxu0 0
        %1091 = vmatpush1.bf16.msra.mxu0 %v1053
        %1092 = vmatprep.subr.bf16.mxu0 0
        %1093 = vmatpush1.bf16.msra.mxu0 %v1054
        %1094 = vmatprep.subr.bf16.mxu0 0
        %1095 = vmatpush1.bf16.msra.mxu0 %v1055
        %1096 = vmatprep.subr.bf16.mxu0 0
        %1097 = vmatpush1.bf16.msra.mxu0 0
        %1098 = vmatprep.subr.bf16.mxu0 0
        %1099 = vmatpush1.bf16.msra.mxu0 0
        %1100 = vmatprep.subr.bf16.mxu0 0
        %1101 = vmatpush1.bf16.msra.mxu0 0
        %1102 = vmatprep.subr.bf16.mxu0 0
        %1103 = vmatpush1.bf16.msra.mxu0 0
        %1104 = vmatprep.subr.bf16.mxu0 0
        %1105 = vmatpush1.bf16.msra.mxu0 0
        %1106 = vmatprep.subr.bf16.mxu0 0
        %1107 = vmatpush1.bf16.msra.mxu0 0
        %1108 = vmatprep.subr.bf16.mxu0 0
        %1109 = vmatpush1.bf16.msra.mxu0 0
        %1110 = vmatprep.subr.bf16.mxu0 0
        %1111 = vmatpush1.bf16.msra.mxu0 0
        %1112 = vmatprep.subr.bf16.mxu0 0
        %1113 = vmatpush1.bf16.msra.mxu0 0
        %1114 = vmatprep.subr.bf16.mxu0 0
        %1115 = vmatpush1.bf16.msra.mxu0 0
        %1116 = vmatprep.subr.bf16.mxu0 0
        %1117 = vmatpush1.bf16.msra.mxu0 0
        %1118 = vmatprep.subr.bf16.mxu0 0
        %1119 = vmatpush1.bf16.msra.mxu0 0
        %1120 = vmatprep.mubr.bf16.mxu0 0
        %1121 = vmatmul.mubr.bf16.gmra.mrb[0].mxu0 %v1077
        %v1122 = vpop.f32.mrb[0].mxu0
        %v1123 = vadd.f32 0.0, %v1122
        %v1124 = vpop.f32.mrb[0].mxu0
        %v1125 = vpop.f32.mrb[0].mxu0
        %v1126 = vadd.f32 0.0, %v1125
        %v1127 = vpop.f32.mrb[0].mxu0
        %1128 = vmatprep.mubr.bf16.mxu0 0
        %1129 = vmatmul.mubr.bf16.gmra.mrb[0].mxu0 %v1080
        %v1130 = vpop.f32.mrb[0].mxu0
        %v1131 = vadd.f32 0.0, %v1130
        %v1132 = vpop.f32.mrb[0].mxu0
        %v1133 = vpop.f32.mrb[0].mxu0
        %v1134 = vadd.f32 0.0, %v1133
        %v1135 = vpop.f32.mrb[0].mxu0
        %1136 = vmatprep.mubr.bf16.mxu0 0
        %1137 = vmatmul.mubr.bf16.gmra.mrb[0].mxu0 %v1083
        %v1138 = vpop.f32.mrb[0].mxu0
        %v1139 = vadd.f32 0.0, %v1138
        %v1140 = vpop.f32.mrb[0].mxu0
        %v1141 = vpop.f32.mrb[0].mxu0
        %v1142 = vadd.f32 0.0, %v1141
        %v1143 = vpop.f32.mrb[0].mxu0
        %1144 = vmatprep.mubr.bf16.mxu0 0
        %1145 = vmatmul.mubr.bf16.gmra.mrb[0].mxu0 %v1086
        %v1146 = vpop.f32.mrb[0].mxu0
        %v1147 = vadd.f32 0.0, %v1146
        %v1148 = vpop.f32.mrb[0].mxu0
        %v1149 = vpop.f32.mrb[0].mxu0
        %v1150 = vadd.f32 0.0, %v1149
        %v1151 = vpop.f32.mrb[0].mxu0
        %1152 = vdwg.mxu0
        %v1153 = vadd.f32 %v913, %v1014
        %v1154 = vadd.f32 %v916, %v1017
        %v1155 = vadd.f32 %v921, %v1022
        %v1156 = vadd.f32 %v924, %v1025
        %v1157 = vadd.f32 %v929, %v1030
        %v1158 = vadd.f32 %v932, %v1033
        %v1159 = vadd.f32 %v937, %v1038
        %v1160 = vadd.f32 %v940, %v1041
        %v1161 = vsub.f32 %v1123, %v913
        %v1162 = vsub.f32 %v1126, %v916
        %v1163 = vsub.f32 %v1131, %v921
        %v1164 = vsub.f32 %v1134, %v924
        %v1165 = vsub.f32 %v1139, %v929
        %v1166 = vsub.f32 %v1142, %v932
        %v1167 = vsub.f32 %v1147, %v937
        %v1168 = vsub.f32 %v1150, %v940
        %v1169 = vadd.f32 %v1161, %v1014
        %v1170 = vadd.f32 %v1162, %v1017
        %v1171 = vadd.f32 %v1163, %v1022
        %v1172 = vadd.f32 %v1164, %v1025
        %v1173 = vadd.f32 %v1165, %v1030
        %v1174 = vadd.f32 %v1166, %v1033
        %v1175 = vadd.f32 %v1167, %v1038
        %v1176 = vadd.f32 %v1168, %v1041
        %v1177 = vld [vmem:[%s7] sm:$0xff]
        %v1178 = vld [vmem:[%s7 + $0x8] sm:$0xff]
        %v1179 = vld [vmem:[#allocation14] sm:$0xff]
        %v1180 = vld [vmem:[#allocation14 + $0x8] sm:$0xff]
        %v1181 = vmul.f32 %v1153, %v1177
        %v1182 = vmul.f32 %v1154, %v1178
        %v1183 = vmul.f32 %v1155, %v1177
        %v1184 = vmul.f32 %v1156, %v1178
        %v1185 = vmul.f32 %v1157, %v1177
        %v1186 = vmul.f32 %v1158, %v1178
        %v1187 = vmul.f32 %v1159, %v1177
        %v1188 = vmul.f32 %v1160, %v1178
        %v1189 = vmul.f32 %v1169, %v1179
        %v1190 = vmul.f32 %v1170, %v1180
        %v1191 = vmul.f32 %v1171, %v1179
        %v1192 = vmul.f32 %v1172, %v1180
        %v1193 = vmul.f32 %v1173, %v1179
        %v1194 = vmul.f32 %v1174, %v1180
        %v1195 = vmul.f32 %v1175, %v1179
        %v1196 = vmul.f32 %v1176, %v1180
        %v1197 = vsub.f32 %v1181, %v1189
        %v1198 = vsub.f32 %v1182, %v1190
        %v1199 = vsub.f32 %v1183, %v1191
        %v1200 = vsub.f32 %v1184, %v1192
        %v1201 = vsub.f32 %v1185, %v1193
        %v1202 = vsub.f32 %v1186, %v1194
        %v1203 = vsub.f32 %v1187, %v1195
        %v1204 = vsub.f32 %v1188, %v1196
        %v1205 = vmul.f32 %v1153, %v1179
        %v1206 = vmul.f32 %v1154, %v1180
        %v1207 = vmul.f32 %v1155, %v1179
        %v1208 = vmul.f32 %v1156, %v1180
        %v1209 = vmul.f32 %v1157, %v1179
        %v1210 = vmul.f32 %v1158, %v1180
        %v1211 = vmul.f32 %v1159, %v1179
        %v1212 = vmul.f32 %v1160, %v1180
        %v1213 = vmul.f32 %v1169, %v1177
        %v1214 = vmul.f32 %v1170, %v1178
        %v1215 = vmul.f32 %v1171, %v1177
        %v1216 = vmul.f32 %v1172, %v1178
        %v1217 = vmul.f32 %v1173, %v1177
        %v1218 = vmul.f32 %v1174, %v1178
        %v1219 = vmul.f32 %v1175, %v1177
        %v1220 = vmul.f32 %v1176, %v1178
        %v1221 = vadd.f32 %v1205, %v1213
        %v1222 = vadd.f32 %v1206, %v1214
        %v1223 = vadd.f32 %v1207, %v1215
        %v1224 = vadd.f32 %v1208, %v1216
        %v1225 = vadd.f32 %v1209, %v1217
        %v1226 = vadd.f32 %v1210, %v1218
        %v1227 = vadd.f32 %v1211, %v1219
        %v1228 = vadd.f32 %v1212, %v1220
        %v1229 = vpack.c.bf16 %v1198, %v1197
        %v1230 = vpack.c.bf16 %v1200, %v1199
        %v1231 = vpack.c.bf16 %v1202, %v1201
        %v1232 = vpack.c.bf16 %v1204, %v1203
        %1233 = vmatprep.subr.bf16.mxu0 0
        %1234 = vmatpush1.bf16.msra.mxu0 %v1229
        %1235 = vmatprep.subr.bf16.mxu0 0
        %1236 = vmatpush1.bf16.msra.mxu0 %v1230
        %1237 = vmatprep.subr.bf16.mxu0 0
        %1238 = vmatpush1.bf16.msra.mxu0 %v1231
        %1239 = vmatprep.subr.bf16.mxu0 0
        %1240 = vmatpush1.bf16.msra.mxu0 %v1232
        %1241 = vmatprep.subr.bf16.mxu0 0
        %1242 = vmatpush1.bf16.msra.mxu0 0
        %1243 = vmatprep.subr.bf16.mxu0 0
        %1244 = vmatpush1.bf16.msra.mxu0 0
        %1245 = vmatprep.subr.bf16.mxu0 0
        %1246 = vmatpush1.bf16.msra.mxu0 0
        %1247 = vmatprep.subr.bf16.mxu0 0
        %1248 = vmatpush1.bf16.msra.mxu0 0
        %1249 = vmatprep.subr.bf16.mxu0 0
        %1250 = vmatpush1.bf16.msra.mxu0 0
        %1251 = vmatprep.subr.bf16.mxu0 0
        %1252 = vmatpush1.bf16.msra.mxu0 0
        %1253 = vmatprep.subr.bf16.mxu0 0
        %1254 = vmatpush1.bf16.msra.mxu0 0
        %1255 = vmatprep.subr.bf16.mxu0 0
        %1256 = vmatpush1.bf16.msra.mxu0 0
        %1257 = vmatprep.subr.bf16.mxu0 0
        %1258 = vmatpush1.bf16.msra.mxu0 0
        %1259 = vmatprep.subr.bf16.mxu0 0
        %1260 = vmatpush1.bf16.msra.mxu0 0
        %1261 = vmatprep.subr.bf16.mxu0 0
        %1262 = vmatpush1.bf16.msra.mxu0 0
        %1263 = vmatprep.subr.bf16.mxu0 0
        %1264 = vmatpush1.bf16.msra.mxu0 0
        %1265 = vmatprep.mubr.bf16.mxu0 0
        %1266 = vmatmul.mubr.bf16.gmra.mrb[0].mxu0 %v867
        %v1267 = vpop.f32.mrb[0].mxu0
        %v1268 = vadd.f32 0.0, %v1267
        %v1269 = vpop.f32.mrb[0].mxu0
        %v1270 = vpop.f32.mrb[0].mxu0
        %v1271 = vadd.f32 0.0, %v1270
        %v1272 = vpop.f32.mrb[0].mxu0
        %1273 = vmatprep.mubr.bf16.mxu0 0
        %1274 = vmatmul.mubr.bf16.gmra.mrb[0].mxu0 %v870
        %v1275 = vpop.f32.mrb[0].mxu0
        %v1276 = vadd.f32 0.0, %v1275
        %v1277 = vpop.f32.mrb[0].mxu0
        %v1278 = vpop.f32.mrb[0].mxu0
        %v1279 = vadd.f32 0.0, %v1278
        %v1280 = vpop.f32.mrb[0].mxu0
        %1281 = vmatprep.mubr.bf16.mxu0 0
        %1282 = vmatmul.mubr.bf16.gmra.mrb[0].mxu0 %v873
        %v1283 = vpop.f32.mrb[0].mxu0
        %v1284 = vadd.f32 0.0, %v1283
        %v1285 = vpop.f32.mrb[0].mxu0
        %v1286 = vpop.f32.mrb[0].mxu0
        %v1287 = vadd.f32 0.0, %v1286
        %v1288 = vpop.f32.mrb[0].mxu0
        %1289 = vmatprep.mubr.bf16.mxu0 0
        %1290 = vmatmul.mubr.bf16.gmra.mrb[0].mxu0 %v876
        %v1291 = vpop.f32.mrb[0].mxu0
        %v1292 = vadd.f32 0.0, %v1291
        %v1293 = vpop.f32.mrb[0].mxu0
        %v1294 = vpop.f32.mrb[0].mxu0
        %v1295 = vadd.f32 0.0, %v1294
        %v1296 = vpop.f32.mrb[0].mxu0
        %1297 = vdwg.mxu0
        %v1298 = vpack.c.bf16 %v1222, %v1221
        %v1299 = vpack.c.bf16 %v1224, %v1223
        %v1300 = vpack.c.bf16 %v1226, %v1225
        %v1301 = vpack.c.bf16 %v1228, %v1227
        %1302 = vmatprep.subr.bf16.mxu0 0
        %1303 = vmatpush1.bf16.msra.mxu0 %v1298
        %1304 = vmatprep.subr.bf16.mxu0 0
        %1305 = vmatpush1.bf16.msra.mxu0 %v1299
        %1306 = vmatprep.subr.bf16.mxu0 0
        %1307 = vmatpush1.bf16.msra.mxu0 %v1300
        %1308 = vmatprep.subr.bf16.mxu0 0
        %1309 = vmatpush1.bf16.msra.mxu0 %v1301
        %1310 = vmatprep.subr.bf16.mxu0 0
        %1311 = vmatpush1.bf16.msra.mxu0 0
        %1312 = vmatprep.subr.bf16.mxu0 0
        %1313 = vmatpush1.bf16.msra.mxu0 0
        %1314 = vmatprep.subr.bf16.mxu0 0
        %1315 = vmatpush1.bf16.msra.mxu0 0
        %1316 = vmatprep.subr.bf16.mxu0 0
        %1317 = vmatpush1.bf16.msra.mxu0 0
        %1318 = vmatprep.subr.bf16.mxu0 0
        %1319 = vmatpush1.bf16.msra.mxu0 0
        %1320 = vmatprep.subr.bf16.mxu0 0
        %1321 = vmatpush1.bf16.msra.mxu0 0
        %1322 = vmatprep.subr.bf16.mxu0 0
        %1323 = vmatpush1.bf16.msra.mxu0 0
        %1324 = vmatprep.subr.bf16.mxu0 0
        %1325 = vmatpush1.bf16.msra.mxu0 0
        %1326 = vmatprep.subr.bf16.mxu0 0
        %1327 = vmatpush1.bf16.msra.mxu0 0
        %1328 = vmatprep.subr.bf16.mxu0 0
        %1329 = vmatpush1.bf16.msra.mxu0 0
        %1330 = vmatprep.subr.bf16.mxu0 0
        %1331 = vmatpush1.bf16.msra.mxu0 0
        %1332 = vmatprep.subr.bf16.mxu0 0
        %1333 = vmatpush1.bf16.msra.mxu0 0
        %1334 = vmatprep.mubr.bf16.mxu0 0
        %1335 = vmatmul.mubr.bf16.gmra.mrb[0].mxu0 %v968
        %v1336 = vpop.f32.mrb[0].mxu0
        %v1337 = vadd.f32 0.0, %v1336
        %v1338 = vpop.f32.mrb[0].mxu0
        %v1339 = vpop.f32.mrb[0].mxu0
        %v1340 = vadd.f32 0.0, %v1339
        %v1341 = vpop.f32.mrb[0].mxu0
        %1342 = vmatprep.mubr.bf16.mxu0 0
        %1343 = vmatmul.mubr.bf16.gmra.mrb[0].mxu0 %v971
        %v1344 = vpop.f32.mrb[0].mxu0
        %v1345 = vadd.f32 0.0, %v1344
        %v1346 = vpop.f32.mrb[0].mxu0
        %v1347 = vpop.f32.mrb[0].mxu0
        %v1348 = vadd.f32 0.0, %v1347
        %v1349 = vpop.f32.mrb[0].mxu0
        %1350 = vmatprep.mubr.bf16.mxu0 0
        %1351 = vmatmul.mubr.bf16.gmra.mrb[0].mxu0 %v974
        %v1352 = vpop.f32.mrb[0].mxu0
        %v1353 = vadd.f32 0.0, %v1352
        %v1354 = vpop.f32.mrb[0].mxu0
        %v1355 = vpop.f32.mrb[0].mxu0
        %v1356 = vadd.f32 0.0, %v1355
        %v1357 = vpop.f32.mrb[0].mxu0
        %1358 = vmatprep.mubr.bf16.mxu0 0
        %1359 = vmatmul.mubr.bf16.gmra.mrb[0].mxu0 %v977
        %v1360 = vpop.f32.mrb[0].mxu0
        %v1361 = vadd.f32 0.0, %v1360
        %v1362 = vpop.f32.mrb[0].mxu0
        %v1363 = vpop.f32.mrb[0].mxu0
        %v1364 = vadd.f32 0.0, %v1363
        %v1365 = vpop.f32.mrb[0].mxu0
        %1366 = vdwg.mxu0
        %v1367 = vadd.f32 %v1197, %v1221
        %v1368 = vadd.f32 %v1198, %v1222
        %v1369 = vadd.f32 %v1199, %v1223
        %v1370 = vadd.f32 %v1200, %v1224
        %v1371 = vadd.f32 %v1201, %v1225
        %v1372 = vadd.f32 %v1202, %v1226
        %v1373 = vadd.f32 %v1203, %v1227
        %v1374 = vadd.f32 %v1204, %v1228
        %v1375 = vpack.c.bf16 %v1368, %v1367
        %v1376 = vpack.c.bf16 %v1370, %v1369
        %v1377 = vpack.c.bf16 %v1372, %v1371
        %v1378 = vpack.c.bf16 %v1374, %v1373
        %v1387 = vunpack.c.l.b16 %v575
        %v1388 = vunpack.c.l.b16 %v576
        %v1389 = vunpack.c.l.b16 %v577
        %v1390 = vunpack.c.l.b16 %v578
        %v1391 = vunpack.c.l.b16 %v579
        %v1392 = vunpack.c.l.b16 %v580
        %v1393 = vunpack.c.l.b16 %v581
        %v1394 = vunpack.c.l.b16 %v582
        %v1395 = vpack.c.b16 %v1388, %v1387
        %v1396 = vpack.c.b16 %v1390, %v1389
        %v1397 = vpack.c.b16 %v1392, %v1391
        %v1398 = vpack.c.b16 %v1394, %v1393
        %v1400 = vsel %vm865, %v1395, 0
        %v1403 = vsel %vm865, %v1396, 0
        %v1406 = vsel %vm865, %v1397, 0
        %v1409 = vsel %vm865, %v1398, 0
        %1411 = vmatprep.subr.bf16.mxu0 0
        %1412 = vmatpush1.bf16.msra.mxu0 %v1375
        %1413 = vmatprep.subr.bf16.mxu0 0
        %1414 = vmatpush1.bf16.msra.mxu0 %v1376
        %1415 = vmatprep.subr.bf16.mxu0 0
        %1416 = vmatpush1.bf16.msra.mxu0 %v1377
        %1417 = vmatprep.subr.bf16.mxu0 0
        %1418 = vmatpush1.bf16.msra.mxu0 %v1378
        %1419 = vmatprep.subr.bf16.mxu0 0
        %1420 = vmatpush1.bf16.msra.mxu0 0
        %1421 = vmatprep.subr.bf16.mxu0 0
        %1422 = vmatpush1.bf16.msra.mxu0 0
        %1423 = vmatprep.subr.bf16.mxu0 0
        %1424 = vmatpush1.bf16.msra.mxu0 0
        %1425 = vmatprep.subr.bf16.mxu0 0
        %1426 = vmatpush1.bf16.msra.mxu0 0
        %1427 = vmatprep.subr.bf16.mxu0 0
        %1428 = vmatpush1.bf16.msra.mxu0 0
        %1429 = vmatprep.subr.bf16.mxu0 0
        %1430 = vmatpush1.bf16.msra.mxu0 0
        %1431 = vmatprep.subr.bf16.mxu0 0
        %1432 = vmatpush1.bf16.msra.mxu0 0
        %1433 = vmatprep.subr.bf16.mxu0 0
        %1434 = vmatpush1.bf16.msra.mxu0 0
        %1435 = vmatprep.subr.bf16.mxu0 0
        %1436 = vmatpush1.bf16.msra.mxu0 0
        %1437 = vmatprep.subr.bf16.mxu0 0
        %1438 = vmatpush1.bf16.msra.mxu0 0
        %1439 = vmatprep.subr.bf16.mxu0 0
        %1440 = vmatpush1.bf16.msra.mxu0 0
        %1441 = vmatprep.subr.bf16.mxu0 0
        %1442 = vmatpush1.bf16.msra.mxu0 0
        %1443 = vmatprep.mubr.bf16.mxu0 0
        %1444 = vmatmul.mubr.bf16.gmra.mrb[0].mxu0 %v1400
        %v1445 = vpop.f32.mrb[0].mxu0
        %v1446 = vadd.f32 0.0, %v1445
        %v1447 = vpop.f32.mrb[0].mxu0
        %v1448 = vpop.f32.mrb[0].mxu0
        %v1449 = vadd.f32 0.0, %v1448
        %v1450 = vpop.f32.mrb[0].mxu0
        %1451 = vmatprep.mubr.bf16.mxu0 0
        %1452 = vmatmul.mubr.bf16.gmra.mrb[0].mxu0 %v1403
        %v1453 = vpop.f32.mrb[0].mxu0
        %v1454 = vadd.f32 0.0, %v1453
        %v1455 = vpop.f32.mrb[0].mxu0
        %v1456 = vpop.f32.mrb[0].mxu0
        %v1457 = vadd.f32 0.0, %v1456
        %v1458 = vpop.f32.mrb[0].mxu0
        %1459 = vmatprep.mubr.bf16.mxu0 0
        %1460 = vmatmul.mubr.bf16.gmra.mrb[0].mxu0 %v1406
        %v1461 = vpop.f32.mrb[0].mxu0
        %v1462 = vadd.f32 0.0, %v1461
        %v1463 = vpop.f32.mrb[0].mxu0
        %v1464 = vpop.f32.mrb[0].mxu0
        %v1465 = vadd.f32 0.0, %v1464
        %v1466 = vpop.f32.mrb[0].mxu0
        %1467 = vmatprep.mubr.bf16.mxu0 0
        %1468 = vmatmul.mubr.bf16.gmra.mrb[0].mxu0 %v1409
        %v1469 = vpop.f32.mrb[0].mxu0
        %v1470 = vadd.f32 0.0, %v1469
        %v1471 = vpop.f32.mrb[0].mxu0
        %v1472 = vpop.f32.mrb[0].mxu0
        %v1473 = vadd.f32 0.0, %v1472
        %v1474 = vpop.f32.mrb[0].mxu0
        %1475 = vdwg.mxu0
        %v1476 = vsub.f32 %v1268, %v1337
        %v1477 = vsub.f32 %v1271, %v1340
        %v1478 = vsub.f32 %v1276, %v1345
        %v1479 = vsub.f32 %v1279, %v1348
        %v1480 = vsub.f32 %v1284, %v1353
        %v1481 = vsub.f32 %v1287, %v1356
        %v1482 = vsub.f32 %v1292, %v1361
        %v1483 = vsub.f32 %v1295, %v1364
        %v1484 = vsub.f32 %v1446, %v1268
        %v1485 = vsub.f32 %v1449, %v1271
        %v1486 = vsub.f32 %v1454, %v1276
        %v1487 = vsub.f32 %v1457, %v1279
        %v1488 = vsub.f32 %v1462, %v1284
        %v1489 = vsub.f32 %v1465, %v1287
        %v1490 = vsub.f32 %v1470, %v1292
        %v1491 = vsub.f32 %v1473, %v1295
        %v1492 = vsub.f32 %v1484, %v1337
        %v1493 = vsub.f32 %v1485, %v1340
        %v1494 = vsub.f32 %v1486, %v1345
        %v1495 = vsub.f32 %v1487, %v1348
        %v1496 = vsub.f32 %v1488, %v1353
        %v1497 = vsub.f32 %v1489, %v1356
        %v1498 = vsub.f32 %v1490, %v1361
        %v1499 = vsub.f32 %v1491, %v1364
        %v1500 = vpack.c.bf16 %v1477, %v1476
        %v1501 = vpack.c.bf16 %v1479, %v1478
        %v1502 = vpack.c.bf16 %v1481, %v1480
        %v1503 = vpack.c.bf16 %v1483, %v1482
        %1504 = vmatprep.subr.bf16.mxu0 0
        %1505 = vmatpush1.bf16.msra.mxu0 %v639
        %1506 = vmatprep.subr.bf16.mxu0 0
        %1507 = vmatpush1.bf16.msra.mxu0 %v640
        %1508 = vmatprep.subr.bf16.mxu0 0
        %1509 = vmatpush1.bf16.msra.mxu0 %v641
        %1510 = vmatprep.subr.bf16.mxu0 0
        %1511 = vmatpush1.bf16.msra.mxu0 %v642
        %1512 = vmatprep.subr.bf16.mxu0 0
        %1513 = vmatpush1.bf16.msra.mxu0 %v643
        %1514 = vmatprep.subr.bf16.mxu0 0
        %1515 = vmatpush1.bf16.msra.mxu0 %v644
        %1516 = vmatprep.subr.bf16.mxu0 0
        %1517 = vmatpush1.bf16.msra.mxu0 %v645
        %1518 = vmatprep.subr.bf16.mxu0 0
        %1519 = vmatpush1.bf16.msra.mxu0 %v646
        %1520 = vmatprep.subr.bf16.mxu0 0
        %1521 = vmatpush1.bf16.msra.mxu0 0
        %1522 = vmatprep.subr.bf16.mxu0 0
        %1523 = vmatpush1.bf16.msra.mxu0 0
        %1524 = vmatprep.subr.bf16.mxu0 0
        %1525 = vmatpush1.bf16.msra.mxu0 0
        %1526 = vmatprep.subr.bf16.mxu0 0
        %1527 = vmatpush1.bf16.msra.mxu0 0
        %1528 = vmatprep.subr.bf16.mxu0 0
        %1529 = vmatpush1.bf16.msra.mxu0 0
        %1530 = vmatprep.subr.bf16.mxu0 0
        %1531 = vmatpush1.bf16.msra.mxu0 0
        %1532 = vmatprep.subr.bf16.mxu0 0
        %1533 = vmatpush1.bf16.msra.mxu0 0
        %1534 = vmatprep.subr.bf16.mxu0 0
        %1535 = vmatpush1.bf16.msra.mxu0 0
        %1536 = vmatprep.mubr.bf16.mxu0 0
        %1537 = vmatmul.mubr.bf16.gmra.mrb[0].mxu0 %v1500
        %v1538 = vpop.f32.mrb[0].mxu0
        %v1539 = vadd.f32 0.0, %v1538
        %v1540 = vpop.f32.mrb[0].mxu0
        %v1541 = vpop.f32.mrb[0].mxu0
        %v1542 = vadd.f32 0.0, %v1541
        %v1543 = vpop.f32.mrb[0].mxu0
        %1544 = vmatprep.mubr.bf16.mxu0 0
        %1545 = vmatmul.mubr.bf16.gmra.mrb[0].mxu0 %v1501
        %v1546 = vpop.f32.mrb[0].mxu0
        %v1547 = vadd.f32 0.0, %v1546
        %v1548 = vpop.f32.mrb[0].mxu0
        %v1549 = vpop.f32.mrb[0].mxu0
        %v1550 = vadd.f32 0.0, %v1549
        %v1551 = vpop.f32.mrb[0].mxu0
        %1552 = vmatprep.mubr.bf16.mxu0 0
        %1553 = vmatmul.mubr.bf16.gmra.mrb[0].mxu0 %v1502
        %v1554 = vpop.f32.mrb[0].mxu0
        %v1555 = vadd.f32 0.0, %v1554
        %v1556 = vpop.f32.mrb[0].mxu0
        %v1557 = vpop.f32.mrb[0].mxu0
        %v1558 = vadd.f32 0.0, %v1557
        %v1559 = vpop.f32.mrb[0].mxu0
        %1560 = vmatprep.mubr.bf16.mxu0 0
        %1561 = vmatmul.mubr.bf16.gmra.mrb[0].mxu0 %v1503
        %v1562 = vpop.f32.mrb[0].mxu0
        %v1563 = vadd.f32 0.0, %v1562
        %v1564 = vpop.f32.mrb[0].mxu0
        %v1565 = vpop.f32.mrb[0].mxu0
        %v1566 = vadd.f32 0.0, %v1565
        %v1567 = vpop.f32.mrb[0].mxu0
        %1568 = vdwg.mxu0
        %v1569 = vpack.c.bf16 %v1493, %v1492
        %v1570 = vpack.c.bf16 %v1495, %v1494
        %v1571 = vpack.c.bf16 %v1497, %v1496
        %v1572 = vpack.c.bf16 %v1499, %v1498
        %1573 = vmatprep.subr.bf16.mxu0 0
        %1574 = vmatpush1.bf16.msra.mxu0 %v752
        %1575 = vmatprep.subr.bf16.mxu0 0
        %1576 = vmatpush1.bf16.msra.mxu0 %v753
        %1577 = vmatprep.subr.bf16.mxu0 0
        %1578 = vmatpush1.bf16.msra.mxu0 %v754
        %1579 = vmatprep.subr.bf16.mxu0 0
        %1580 = vmatpush1.bf16.msra.mxu0 %v755
        %1581 = vmatprep.subr.bf16.mxu0 0
        %1582 = vmatpush1.bf16.msra.mxu0 %v756
        %1583 = vmatprep.subr.bf16.mxu0 0
        %1584 = vmatpush1.bf16.msra.mxu0 %v757
        %1585 = vmatprep.subr.bf16.mxu0 0
        %1586 = vmatpush1.bf16.msra.mxu0 %v758
        %1587 = vmatprep.subr.bf16.mxu0 0
        %1588 = vmatpush1.bf16.msra.mxu0 %v759
        %1589 = vmatprep.subr.bf16.mxu0 0
        %1590 = vmatpush1.bf16.msra.mxu0 0
        %1591 = vmatprep.subr.bf16.mxu0 0
        %1592 = vmatpush1.bf16.msra.mxu0 0
        %1593 = vmatprep.subr.bf16.mxu0 0
        %1594 = vmatpush1.bf16.msra.mxu0 0
        %1595 = vmatprep.subr.bf16.mxu0 0
        %1596 = vmatpush1.bf16.msra.mxu0 0
        %1597 = vmatprep.subr.bf16.mxu0 0
        %1598 = vmatpush1.bf16.msra.mxu0 0
        %1599 = vmatprep.subr.bf16.mxu0 0
        %1600 = vmatpush1.bf16.msra.mxu0 0
        %1601 = vmatprep.subr.bf16.mxu0 0
        %1602 = vmatpush1.bf16.msra.mxu0 0
        %1603 = vmatprep.subr.bf16.mxu0 0
        %1604 = vmatpush1.bf16.msra.mxu0 0
        %1605 = vmatprep.mubr.bf16.mxu0 0
        %1606 = vmatmul.mubr.bf16.gmra.mrb[0].mxu0 %v1569
        %v1607 = vpop.f32.mrb[0].mxu0
        %v1608 = vadd.f32 0.0, %v1607
        %v1609 = vpop.f32.mrb[0].mxu0
        %v1610 = vpop.f32.mrb[0].mxu0
        %v1611 = vadd.f32 0.0, %v1610
        %v1612 = vpop.f32.mrb[0].mxu0
        %1613 = vmatprep.mubr.bf16.mxu0 0
        %1614 = vmatmul.mubr.bf16.gmra.mrb[0].mxu0 %v1570
        %v1615 = vpop.f32.mrb[0].mxu0
        %v1616 = vadd.f32 0.0, %v1615
        %v1617 = vpop.f32.mrb[0].mxu0
        %v1618 = vpop.f32.mrb[0].mxu0
        %v1619 = vadd.f32 0.0, %v1618
        %v1620 = vpop.f32.mrb[0].mxu0
        %1621 = vmatprep.mubr.bf16.mxu0 0
        %1622 = vmatmul.mubr.bf16.gmra.mrb[0].mxu0 %v1571
        %v1623 = vpop.f32.mrb[0].mxu0
        %v1624 = vadd.f32 0.0, %v1623
        %v1625 = vpop.f32.mrb[0].mxu0
        %v1626 = vpop.f32.mrb[0].mxu0
        %v1627 = vadd.f32 0.0, %v1626
        %v1628 = vpop.f32.mrb[0].mxu0
        %1629 = vmatprep.mubr.bf16.mxu0 0
        %1630 = vmatmul.mubr.bf16.gmra.mrb[0].mxu0 %v1572
        %v1631 = vpop.f32.mrb[0].mxu0
        %v1632 = vadd.f32 0.0, %v1631
        %v1633 = vpop.f32.mrb[0].mxu0
        %v1634 = vpop.f32.mrb[0].mxu0
        %v1635 = vadd.f32 0.0, %v1634
        %v1636 = vpop.f32.mrb[0].mxu0
        %1637 = vdwg.mxu0
        %v1638 = vadd.f32 %v1476, %v1492
        %v1639 = vadd.f32 %v1477, %v1493
        %v1640 = vadd.f32 %v1478, %v1494
        %v1641 = vadd.f32 %v1479, %v1495
        %v1642 = vadd.f32 %v1480, %v1496
        %v1643 = vadd.f32 %v1481, %v1497
        %v1644 = vadd.f32 %v1482, %v1498
        %v1645 = vadd.f32 %v1483, %v1499
        %v1646 = vpack.c.bf16 %v1639, %v1638
        %v1647 = vpack.c.bf16 %v1641, %v1640
        %v1648 = vpack.c.bf16 %v1643, %v1642
        %v1649 = vpack.c.bf16 %v1645, %v1644
        %v1666 = vunpack.c.l.b16 %v535
        %v1667 = vunpack.c.l.b16 %v536
        %v1668 = vunpack.c.l.b16 %v537
        %v1669 = vunpack.c.l.b16 %v538
        %v1670 = vunpack.c.l.b16 %v539
        %v1671 = vunpack.c.l.b16 %v540
        %v1672 = vunpack.c.l.b16 %v541
        %v1673 = vunpack.c.l.b16 %v542
        %v1674 = vunpack.c.l.b16 %v543
        %v1675 = vunpack.c.l.b16 %v544
        %v1676 = vunpack.c.l.b16 %v545
        %v1677 = vunpack.c.l.b16 %v546
        %v1678 = vunpack.c.l.b16 %v547
        %v1679 = vunpack.c.l.b16 %v548
        %v1680 = vunpack.c.l.b16 %v549
        %v1681 = vunpack.c.l.b16 %v550
        %v1682 = vpack.c.b16 %v1667, %v1666
        %v1683 = vpack.c.b16 %v1669, %v1668
        %v1684 = vpack.c.b16 %v1671, %v1670
        %v1685 = vpack.c.b16 %v1673, %v1672
        %v1686 = vpack.c.b16 %v1675, %v1674
        %v1687 = vpack.c.b16 %v1677, %v1676
        %v1688 = vpack.c.b16 %v1679, %v1678
        %v1689 = vpack.c.b16 %v1681, %v1680
        %1698 = vmatprep.subr.bf16.mxu0 0
        %1699 = vmatpush1.bf16.msra.mxu0 %v1682
        %1700 = vmatprep.subr.bf16.mxu0 0
        %1701 = vmatpush1.bf16.msra.mxu0 %v1683
        %1702 = vmatprep.subr.bf16.mxu0 0
        %1703 = vmatpush1.bf16.msra.mxu0 %v1684
        %1704 = vmatprep.subr.bf16.mxu0 0
        %1705 = vmatpush1.bf16.msra.mxu0 %v1685
        %1706 = vmatprep.subr.bf16.mxu0 0
        %1707 = vmatpush1.bf16.msra.mxu0 %v1686
        %1708 = vmatprep.subr.bf16.mxu0 0
        %1709 = vmatpush1.bf16.msra.mxu0 %v1687
        %1710 = vmatprep.subr.bf16.mxu0 0
        %1711 = vmatpush1.bf16.msra.mxu0 %v1688
        %1712 = vmatprep.subr.bf16.mxu0 0
        %1713 = vmatpush1.bf16.msra.mxu0 %v1689
        %1714 = vmatprep.subr.bf16.mxu0 0
        %1715 = vmatpush1.bf16.msra.mxu0 0
        %1716 = vmatprep.subr.bf16.mxu0 0
        %1717 = vmatpush1.bf16.msra.mxu0 0
        %1718 = vmatprep.subr.bf16.mxu0 0
        %1719 = vmatpush1.bf16.msra.mxu0 0
        %1720 = vmatprep.subr.bf16.mxu0 0
        %1721 = vmatpush1.bf16.msra.mxu0 0
        %1722 = vmatprep.subr.bf16.mxu0 0
        %1723 = vmatpush1.bf16.msra.mxu0 0
        %1724 = vmatprep.subr.bf16.mxu0 0
        %1725 = vmatpush1.bf16.msra.mxu0 0
        %1726 = vmatprep.subr.bf16.mxu0 0
        %1727 = vmatpush1.bf16.msra.mxu0 0
        %1728 = vmatprep.subr.bf16.mxu0 0
        %1729 = vmatpush1.bf16.msra.mxu0 0
        %1730 = vmatprep.mubr.bf16.mxu0 0
        %1731 = vmatmul.mubr.bf16.gmra.mrb[0].mxu0 %v1646
        %v1732 = vpop.f32.mrb[0].mxu0
        %v1733 = vadd.f32 0.0, %v1732
        %v1734 = vpop.f32.mrb[0].mxu0
        %v1735 = vpop.f32.mrb[0].mxu0
        %v1736 = vadd.f32 0.0, %v1735
        %v1737 = vpop.f32.mrb[0].mxu0
        %1738 = vmatprep.mubr.bf16.mxu0 0
        %1739 = vmatmul.mubr.bf16.gmra.mrb[0].mxu0 %v1647
        %v1740 = vpop.f32.mrb[0].mxu0
        %v1741 = vadd.f32 0.0, %v1740
        %v1742 = vpop.f32.mrb[0].mxu0
        %v1743 = vpop.f32.mrb[0].mxu0
        %v1744 = vadd.f32 0.0, %v1743
        %v1745 = vpop.f32.mrb[0].mxu0
        %1746 = vmatprep.mubr.bf16.mxu0 0
        %1747 = vmatmul.mubr.bf16.gmra.mrb[0].mxu0 %v1648
        %v1748 = vpop.f32.mrb[0].mxu0
        %v1749 = vadd.f32 0.0, %v1748
        %v1750 = vpop.f32.mrb[0].mxu0
        %v1751 = vpop.f32.mrb[0].mxu0
        %v1752 = vadd.f32 0.0, %v1751
        %v1753 = vpop.f32.mrb[0].mxu0
        %1754 = vmatprep.mubr.bf16.mxu0 0
        %1755 = vmatmul.mubr.bf16.gmra.mrb[0].mxu0 %v1649
        %v1756 = vpop.f32.mrb[0].mxu0
        %v1757 = vadd.f32 0.0, %v1756
        %v1758 = vpop.f32.mrb[0].mxu0
        %v1759 = vpop.f32.mrb[0].mxu0
        %v1760 = vadd.f32 0.0, %v1759
        %v1761 = vpop.f32.mrb[0].mxu0
        %1762 = vdwg.mxu0
        %v1763 = vsub.f32 %v1539, %v1608
        %v1764 = vsub.f32 %v1542, %v1611
        %v1765 = vsub.f32 %v1547, %v1616
        %v1766 = vsub.f32 %v1550, %v1619
        %v1767 = vsub.f32 %v1555, %v1624
        %v1768 = vsub.f32 %v1558, %v1627
        %v1769 = vsub.f32 %v1563, %v1632
        %v1770 = vsub.f32 %v1566, %v1635
        %v1771 = vsub.f32 %v1733, %v1539
        %v1772 = vsub.f32 %v1736, %v1542
        %v1773 = vsub.f32 %v1741, %v1547
        %v1774 = vsub.f32 %v1744, %v1550
        %v1775 = vsub.f32 %v1749, %v1555
        %v1776 = vsub.f32 %v1752, %v1558
        %v1777 = vsub.f32 %v1757, %v1563
        %v1778 = vsub.f32 %v1760, %v1566
        %v1779 = vsub.f32 %v1771, %v1608
        %v1780 = vsub.f32 %v1772, %v1611
        %v1781 = vsub.f32 %v1773, %v1616
        %v1782 = vsub.f32 %v1774, %v1619
        %v1783 = vsub.f32 %v1775, %v1624
        %v1784 = vsub.f32 %v1776, %v1627
        %v1785 = vsub.f32 %v1777, %v1632
        %v1786 = vsub.f32 %v1778, %v1635
        %v1787 = vmul.f32 %v1763, %v1763
        %v1788 = vmul.f32 %v1764, %v1764
        %v1789 = vmul.f32 %v1765, %v1765
        %v1790 = vmul.f32 %v1766, %v1766
        %v1791 = vmul.f32 %v1767, %v1767
        %v1792 = vmul.f32 %v1768, %v1768
        %v1793 = vmul.f32 %v1769, %v1769
        %v1794 = vmul.f32 %v1770, %v1770
        %v1795 = vmul.f32 %v1779, %v1779
        %v1796 = vmul.f32 %v1780, %v1780
        %v1797 = vmul.f32 %v1781, %v1781
        %v1798 = vmul.f32 %v1782, %v1782
        %v1799 = vmul.f32 %v1783, %v1783
        %v1800 = vmul.f32 %v1784, %v1784
        %v1801 = vmul.f32 %v1785, %v1785
        %v1802 = vmul.f32 %v1786, %v1786
        %v1803 = vadd.f32 %v1787, %v1795
        %v1804 = vadd.f32 %v1788, %v1796
        %v1805 = vadd.f32 %v1789, %v1797
        %v1806 = vadd.f32 %v1790, %v1798
        %v1807 = vadd.f32 %v1791, %v1799
        %v1808 = vadd.f32 %v1792, %v1800
        %v1809 = vadd.f32 %v1793, %v1801
        %v1810 = vadd.f32 %v1794, %v1802
        %v1811 = vrsqrt.pop %v1803
        %v1812 = vmul.f32 %v1803, %v1811
        %vm1813 = vcmp.eq.f32.partialorder %v1803, inf
        %v1814 = vsel %vm1813, %v1803, %v1812
        %vm1815 = vcmp.eq.f32.partialorder %v1803, 0.0
        %v1816 = vand.u32 %v1803, 2147483648
        %v1817 = vsel %vm1815, %v1816, %v1814
        %v1818 = vrsqrt.pop %v1804
        %v1819 = vmul.f32 %v1804, %v1818
        %vm1820 = vcmp.eq.f32.partialorder %v1804, inf
        %v1821 = vsel %vm1820, %v1804, %v1819
        %vm1822 = vcmp.eq.f32.partialorder %v1804, 0.0
        %v1823 = vand.u32 %v1804, 2147483648
        %v1824 = vsel %vm1822, %v1823, %v1821
        %v1825 = vrsqrt.pop %v1805
        %v1826 = vmul.f32 %v1805, %v1825
        %vm1827 = vcmp.eq.f32.partialorder %v1805, inf
        %v1828 = vsel %vm1827, %v1805, %v1826
        %vm1829 = vcmp.eq.f32.partialorder %v1805, 0.0
        %v1830 = vand.u32 %v1805, 2147483648
        %v1831 = vsel %vm1829, %v1830, %v1828
        %v1832 = vrsqrt.pop %v1806
        %v1833 = vmul.f32 %v1806, %v1832
        %vm1834 = vcmp.eq.f32.partialorder %v1806, inf
        %v1835 = vsel %vm1834, %v1806, %v1833
        %vm1836 = vcmp.eq.f32.partialorder %v1806, 0.0
        %v1837 = vand.u32 %v1806, 2147483648
        %v1838 = vsel %vm1836, %v1837, %v1835
        %v1839 = vrsqrt.pop %v1807
        %v1840 = vmul.f32 %v1807, %v1839
        %vm1841 = vcmp.eq.f32.partialorder %v1807, inf
        %v1842 = vsel %vm1841, %v1807, %v1840
        %vm1843 = vcmp.eq.f32.partialorder %v1807, 0.0
        %v1844 = vand.u32 %v1807, 2147483648
        %v1845 = vsel %vm1843, %v1844, %v1842
        %v1846 = vrsqrt.pop %v1808
        %v1847 = vmul.f32 %v1808, %v1846
        %vm1848 = vcmp.eq.f32.partialorder %v1808, inf
        %v1849 = vsel %vm1848, %v1808, %v1847
        %vm1850 = vcmp.eq.f32.partialorder %v1808, 0.0
        %v1851 = vand.u32 %v1808, 2147483648
        %v1852 = vsel %vm1850, %v1851, %v1849
        %v1853 = vrsqrt.pop %v1809
        %v1854 = vmul.f32 %v1809, %v1853
        %vm1855 = vcmp.eq.f32.partialorder %v1809, inf
        %v1856 = vsel %vm1855, %v1809, %v1854
        %vm1857 = vcmp.eq.f32.partialorder %v1809, 0.0
        %v1858 = vand.u32 %v1809, 2147483648
        %v1859 = vsel %vm1857, %v1858, %v1856
        %v1860 = vrsqrt.pop %v1810
        %v1861 = vmul.f32 %v1810, %v1860
        %vm1862 = vcmp.eq.f32.partialorder %v1810, inf
        %v1863 = vsel %vm1862, %v1810, %v1861
        %vm1864 = vcmp.eq.f32.partialorder %v1810, 0.0
        %v1865 = vand.u32 %v1810, 2147483648
        %v1866 = vsel %vm1864, %v1865, %v1863
        %1867 = vst [vmem:[%s491] sm:$0xff] %v1817
        %1868 = vst [vmem:[%s491 + $0x8] sm:$0xff] %v1824
        %1869 = vst [vmem:[%s491 + $0x10] sm:$0xff] %v1831
        %1870 = vst [vmem:[%s491 + $0x18] sm:$0xff] %v1838
        %1871 = vst [vmem:[%s491 + $0x20] sm:$0xff] %v1845
        %1872 = vst [vmem:[%s491 + $0x28] sm:$0xff] %v1852
        %1873 = vst [vmem:[%s491 + $0x30] sm:$0xff] %v1859
        %1874 = vst [vmem:[%s491 + $0x38] sm:$0xff] %v1866
        %s1875 = sand.u32 %s252, 1
        %s1876 = scalar_lea.sflag [#allocation4], %s1875
        %s1877 = sand.u32 %s252, 1
        %s1878 = smul.addr %s1877, 64
        %s1879 = scalar_lea.vmem [#allocation17], %s1878
        // Predicated region
        $region97: #{tpu_custom_call.1} parent=59 // pred_check
          %p1880 = pneg %p262
        $region98: #{tpu_custom_call.1} parent=59 // pred_check_branch
          %1882 = sbr.rel (%p1880) target = $region100
        $region99: #{tpu_custom_call.1} parent=59 // pred_region
          %s1883 = smul.u32 8, %s29
          %s1885 = ssub.s32 1024, 1024
          %1886 = vsyncadd %s1876, %s1885
          %s1887 = smul.addr %s1883, 128
          %s1888 = scalar_lea.hbm %s10, %s1887
          %s1889 = sshll.u32 %s1879, 4
          %s1890 = int_to_ptr.vmem [resolvable:$true] %s1889
          %1895 = dma.vmem_to_hbm [thread:$0]  %s1890, 1024, %s1888, %s1876, 128, 128, 8
        $region100: #{tpu_custom_call.1} parent=59 // pred_fallthru
          _
      $region60: #{tpu_custom_call.1} parent=5 // pred_fallthru
        _
      %p1896 = scmp.le.s32.totalorder 2, %s24
      // Predicated region
      $region101: #{tpu_custom_call.1} parent=5 // pred_check
        %p1897 = pneg %p1896
      $region102: #{tpu_custom_call.1} parent=5 // pred_check_branch
        %1899 = sbr.rel (%p1897) target = $region104
      $region103: #{tpu_custom_call.1} parent=5 // pred_region
        %s1900 = ssub.s32 %s24, 2
        // Predicated region
        $region105: #{tpu_custom_call.1} parent=103 // pred_check
          %p1901 = pneg %p268
        $region106: #{tpu_custom_call.1} parent=103 // pred_check_branch
          %1903 = sbr.rel (%p1901) target = $region108
        $region107: #{tpu_custom_call.1} parent=103 // pred_region
          %s1904 = sand.u32 %s253, 1
          %s1905 = scalar_lea.sflag [#allocation4], %s1904
          %s1906 = sand.u32 %s253, 1
          %s1907 = smul.addr %s1906, 64
          %s1908 = scalar_lea.vmem [#allocation17], %s1907
          %1909 = dma.done %s1905, 1024
        $region108: #{tpu_custom_call.1} parent=103 // pred_fallthru
          _
      $region104: #{tpu_custom_call.1} parent=5 // pred_fallthru
        _
    $region6: #{tpu_custom_call.1} parent=1 // loop_footer
      %s28 = sadd.s32 1, %s24
    $region7: #{tpu_custom_call.1} parent=1 // loop_footer_branch
      %23 = sbr.rel target = $region3
    $region8: #{tpu_custom_call.1} parent=1 // loop_exit
      _
    %1910 = vsyncpa [#allocation3], 1
    %s1911 = scalar_lea.sflag [#allocation3], 1
    %1912 = vsyncpa %s1911, 1
    %1913 = vsyncpa [#allocation6], 1
    %1914 = vsyncpa [#allocation9], 1
    %1915 = vsyncpa [#allocation12], 1
    %1916 = vsyncpa [#allocation15], 1
    %1917 = vsyncpa [#allocation4], 1
    %s1918 = scalar_lea.sflag [#allocation4], 1
    %1919 = vsyncpa %s1918, 1

</llo_original>
